<compile_context>
chip_gen: v5e
topology: v5e:2x2
jax: 0.10.0
libtpu: 0.0.40
codegen_flags: <defaults>
</compile_context>

<pallas_src>
import functools

import jax
import jax.numpy as jnp
from jax import lax
from jax.experimental import pallas as pl
from jax.experimental.pallas import tpu as pltpu

# MXU operand dtype for the GRU-chain matmuls. bf16 halves-to-quarters MXU time
# on all generations; set to jnp.float32 to match the pure-f32 reference <1e-3.
_DOT_DTYPE = jnp.bfloat16


def _time_gru_kernel(x_ref, tau_ref, h0_ref, w_ref, out_ref, xp_sc, *, H, K, OUT, R):
    T, B, D = x_ref.shape  # time-major batch tile; B is a multiple of 8

    # ---- static row/lane views into the packed f32 parameter slab ----
    w_h0t = w_ref[R["w_h0t"]:R["w_h0t"] + H, :H]          # (H, H)
    w_iht = w_ref[R["w_iht"]:R["w_iht"] + D, :3 * H]      # (D, 3H)  gates r|z|n
    w_hht = w_ref[R["w_hht"]:R["w_hht"] + H, :3 * H]      # (H, 3H)  fused hidden
    t2v_w = w_ref[R["t2v_w"]:R["t2v_w"] + 1, :K]          # (1, K)
    fc_wh = w_ref[R["fc_wh"]:R["fc_wh"] + H, :OUT]        # (H, OUT)
    fc_wt = w_ref[R["fc_wt"]:R["fc_wt"] + K, :OUT]        # (K, OUT)
    rb = R["bias"]
    b_h0 = w_ref[rb + 0:rb + 1, :H]                       # (1, H)
    b_x3 = w_ref[rb + 1:rb + 2, :3 * H]                   # (1, 3H) folded input biases
    b_hn = w_ref[rb + 2:rb + 3, :H]                       # (1, H)  n-gate hidden bias
    t2v_b = w_ref[rb + 3:rb + 4, :K]                      # (1, K)
    fc_b = w_ref[rb + 4:rb + 5, :OUT]                     # (1, OUT)

    # ---- Normalizer: per-sample mean/std over the time axis ----
    # TODO(synk): exact `layer.Normalizer` semantics unavailable; assuming
    # instance mean/std over time, denormalize with the same stats
    # (requires output_dim == input_dim, enforced in the wrapper).
    X = x_ref[...]                                        # (T, B, D) time-major
    mu = jnp.mean(X, axis=0, keepdims=True)               # (1, B, D)
    sigma = jnp.sqrt(jnp.mean((X - mu) ** 2, axis=0, keepdims=True)) + 1e-8
    Xn = (X - mu) / sigma

    # ---- batched input projection for all timesteps (one MXU matmul) ----
    # (T*B, D) merge touches only the leading axes (B % 8 == 0): layout-neutral.
    xp = jnp.dot(Xn.reshape(T * B, D).astype(_DOT_DTYPE),
                 w_iht.astype(_DOT_DTYPE),
                 preferred_element_type=jnp.float32)      # (T*B, 3H) f32
    xp_sc[...] = (xp + b_x3).reshape(T, B, 3 * H)         # time-major gate streams

    # ---- trainable initial-state transform (h0_fc: Linear(H, H)), f32 ----
    h = jnp.dot(h0_ref[...], w_h0t,
                preferred_element_type=jnp.float32) + b_h0    # (B, H)

    # ---- GRU recurrence, PyTorch gate order (r, z, n) ----
    # One fused (B,H)x(H,3H) bf16 dot per step; per-gate lane splits ride the
    # idle XLU slot while the chain waits on the MXU. fori_loop bounds vreg
    # live ranges at large B; unroll=True keeps scheduler visibility.
    w_hh_b = w_hht.astype(_DOT_DTYPE)

    def step(t, h):
        xp_t = xp_sc[t]                                   # (B, 3H) contiguous block
        hp = jnp.dot(h.astype(_DOT_DTYPE), w_hh_b,
                     preferred_element_type=jnp.float32)  # (B, 3H)
        r = jax.nn.sigmoid(xp_t[:, :H] + hp[:, :H])
        z = jax.nn.sigmoid(xp_t[:, H:2 * H] + hp[:, H:2 * H])
        n = jnp.tanh(xp_t[:, 2 * H:] + r * (hp[:, 2 * H:] + b_hn))
        return n + z * (h - n)                            # == (1-z)*n + z*h

    h = lax.fori_loop(0, T, step, h, unroll=True)

    # ---- Time2Vec of the last tick: channel 0 linear, channels 1..K-1 sin() ----
    te = tau_ref[...] * t2v_w + t2v_b                     # (B,1)*(1,K)+(1,K) -> (B,K)
    lane = lax.broadcasted_iota(jnp.int32, te.shape, 1)
    te = jnp.where(lane == 0, te, jnp.sin(te))

    # ---- head over concat([h_T, te]) as a split f32 matmul (no lane concat) ----
    pred = (jnp.dot(h, fc_wh, preferred_element_type=jnp.float32)
            + jnp.dot(te, fc_wt, preferred_element_type=jnp.float32)
            + fc_b)                                       # (B, OUT)

    # ---- denormalize with the input stats (OUT == D) ----
    out_ref[...] = pred * sigma[0] + mu[0]


def pack_params(params, *, hidden_dim, input_dim, time_embed_dim, output_dim):
    """Build the single lane-dense f32 parameter slab ONCE at parameter-load time."""
    H, D, K, OUT = hidden_dim, input_dim, time_embed_dim, output_dim
    C = 128                                               # one lane tile wide
    if not (3 * H <= C and K <= C and OUT <= C and D <= C):
        # TODO(synk): generalize packing/views to multi-lane-tile weight blocks.
        raise ValueError("pack_params assumes 3*hidden, time_embed, output and "
                         "input dims each fit a single 128-lane tile")

    def pad8(r):
        return -(-r // 8) * 8

    rows, blocks, offset = {}, [], 0

    def add(name, mat):
        nonlocal offset
        mat = jnp.asarray(mat, jnp.float32)
        r, c = mat.shape
        rows[name] = offset
        blocks.append(jnp.zeros((pad8(r), C), jnp.float32).at[:r, :c].set(mat))
        offset += pad8(r)

    w_ih, w_hh = params["w_ih"], params["w_hh"]
    b_ih, b_hh = params["b_ih"], params["b_hh"]

    add("w_h0t", params["w_h0"].T)                        # (H, H)
    add("w_iht", w_ih.T)                                  # (D, 3H)  gate order r|z|n
    add("w_hht", w_hh.T)                                  # (H, 3H)  fused hidden weights
    add("t2v_w", params["t2v_w"])                         # (1, K)
    add("fc_wh", params["fc_w"][:, :H].T)                 # (H, OUT)
    add("fc_wt", params["fc_w"][:, H:].T)                 # (K, OUT)

    # Bias rows: one bias vector per sublane row, each starting at lane 0.
    bias = jnp.zeros((8, C), jnp.float32)
    bias = bias.at[0, :H].set(params["b_h0"])
    bias = bias.at[1, :H].set(b_ih[:H] + b_hh[:H])                   # folded r bias
    bias = bias.at[1, H:2 * H].set(b_ih[H:2 * H] + b_hh[H:2 * H])    # folded z bias
    bias = bias.at[1, 2 * H:3 * H].set(b_ih[2 * H:])                 # n input bias
    bias = bias.at[2, :H].set(b_hh[2 * H:])                          # n hidden bias
    bias = bias.at[3, :K].set(params["t2v_b"])
    bias = bias.at[4, :OUT].set(params["fc_b"])
    rows["bias"] = offset
    blocks.append(bias)
    offset += 8

    slab = jnp.concatenate(blocks, axis=0)                # (rows, 128) f32
    return jax.device_put(slab), rows


def make_time_gru_forward(slab, rows, *, input_dim, hidden_dim, time_embed_dim,
                          output_dim, max_batch_tile=512):
    H, K, OUT, D = hidden_dim, time_embed_dim, output_dim, input_dim
    if OUT != D:
        # TODO(synk): real `layer.Normalizer` denorm semantics needed for OUT != D.
        raise ValueError("denormalizing with the input stats requires "
                         "output_dim == input_dim")

    kernel = functools.partial(_time_gru_kernel, H=H, K=K, OUT=OUT, R=rows)
    cdiv = lambda a, b: -(-a // b)
    round8 = lambda r: cdiv(r, 8) * 8

    @jax.jit
    def forward(X, time_ticks, h0):
        B, T, Din = X.shape
        assert Din == D

        # ---- batch tiling plan: one big tile up to max_batch_tile rows, else
        # >=2 equal tiles (also feeds the second TensorCore on v7x). ----
        B8 = round8(B)
        if B8 <= max_batch_tile:
            B_TILE, n_tiles = B8, 1
        else:
            n_tiles = cdiv(B8, max_batch_tile)
            B_TILE = round8(cdiv(B8, n_tiles))
            n_tiles = cdiv(B8, B_TILE)
        B_pad = B_TILE * n_tiles

        # ---- host-side layout plumbing (cheap XLA ops, outside the kernel) ----
        Xt = jnp.transpose(jnp.asarray(X, jnp.float32), (1, 0, 2))  # (T, B, D)
        tau = jnp.asarray(time_ticks, jnp.float32)[:, -1, :]        # only last tick used
        h0b = jnp.asarray(h0, jnp.float32)[0]                       # (B, H)
        if B_pad != B:                                              # fill sublanes for free
            Xt = jnp.pad(Xt, ((0, 0), (0, B_pad - B), (0, 0)))
            tau = jnp.pad(tau, ((0, B_pad - B), (0, 0)))
            h0b = jnp.pad(h0b, ((0, B_pad - B), (0, 0)))

        # ---- scheduler hints: flop/byte estimate + explicit scoped-VMEM limit ----
        flops = (2 * B_pad * T * D * 3 * H + 2 * B_pad * T * H * 3 * H
                 + 2 * B_pad * H * H + 2 * B_pad * (H + K) * OUT)
        transcend = B_pad * T * 3 * H + B_pad * K
        bytes_acc = 4 * (B_pad * (T * D + 1 + H + OUT) + slab.size)
        cost = pl.CostEstimate(flops=flops, transcendentals=transcend,
                               bytes_accessed=bytes_acc)
        tile_bytes = 4 * (2 * B_TILE * (T * D + 1 + H + OUT)   # double-buffered I/O tiles
                          + 2 * slab.size                      # resident weight slab
                          + T * B_TILE * 3 * H                 # gate-stream scratch
                          + 8 * B_TILE * 3 * H)                # vreg working-set headroom
        vmem_limit = int(min(max(2 * tile_bytes, 32 << 20), 48 << 20))  # v7x-safe cap

        out = pl.pallas_call(
            kernel,
            out_shape=jax.ShapeDtypeStruct((B_pad, OUT), jnp.float32),
            grid=(n_tiles,),
            in_specs=[
                pl.BlockSpec((T, B_TILE, D), lambda i: (0, i, 0)),  # time-major X
                pl.BlockSpec((B_TILE, 1), lambda i: (i, 0)),
                pl.BlockSpec((B_TILE, H), lambda i: (i, 0)),
                pl.BlockSpec(slab.shape, lambda i: (0, 0)),         # resident weights
            ],
            out_specs=pl.BlockSpec((B_TILE, OUT), lambda i: (i, 0)),
            scratch_shapes=[pltpu.VMEM((T, B_TILE, 3 * H), jnp.float32)],
            compiler_params=pltpu.CompilerParams(
                dimension_semantics=("parallel",),        # batch tiles across TCs (v7x)
                vmem_limit_bytes=vmem_limit),
            cost_estimate=cost,
        )(Xt, tau, h0b, slab)
        return out[:B]

    return forward


def reference_forward(X, tt, h0, params):
    """Pure-JAX f32 reference with identical semantics (unpacked params)."""
    H = params["w_hh"].shape[1]
    mu = X.mean(axis=1, keepdims=True)
    sigma = jnp.sqrt(((X - mu) ** 2).mean(axis=1, keepdims=True)) + 1e-8
    Xn = (X - mu) / sigma
    h = h0[0] @ params["w_h0"].T + params["b_h0"]

    def step(h, x_t):
        xp = x_t @ params["w_ih"].T + params["b_ih"]
        hp = h @ params["w_hh"].T + params["b_hh"]
        r = jax.nn.sigmoid(xp[:, :H] + hp[:, :H])
        z = jax.nn.sigmoid(xp[:, H:2 * H] + hp[:, H:2 * H])
        n = jnp.tanh(xp[:, 2 * H:] + r * hp[:, 2 * H:])
        return (1 - z) * n + z * h, None

    h_T, _ = lax.scan(step, h, jnp.transpose(Xn, (1, 0, 2)))
    tau = tt[:, -1, :]
    te = tau @ params["t2v_w"] + params["t2v_b"]
    te = jnp.concatenate([te[:, :1], jnp.sin(te[:, 1:])], axis=-1)
    pred = jnp.concatenate([h_T, te], axis=-1) @ params["fc_w"].T + params["fc_b"]
    return pred * sigma[:, 0, :] + mu[:, 0, :]


if __name__ == "__main__":
    input_dim, hidden_dim, output_dim = 4, 32, 4
    time_embed_dim = 8
    B, T = 2, 8

    key = jax.random.PRNGKey(0)
    ks = jax.random.split(key, 12)

    def init(k, shape, scale=0.1):
        return (scale * jax.random.normal(k, shape)).astype(jnp.float32)

    params = {
        "w_h0": init(ks[0], (hidden_dim, hidden_dim)),
        "b_h0": init(ks[1], (hidden_dim,)),
        "w_ih": init(ks[2], (3 * hidden_dim, input_dim)),
        "w_hh": init(ks[3], (3 * hidden_dim, hidden_dim)),
        "b_ih": init(ks[4], (3 * hidden_dim,)),
        "b_hh": init(ks[5], (3 * hidden_dim,)),
        "t2v_w": init(ks[6], (1, time_embed_dim), scale=0.5),
        "t2v_b": init(ks[7], (time_embed_dim,), scale=0.5),
        "fc_w": init(ks[8], (output_dim, hidden_dim + time_embed_dim)),
        "fc_b": init(ks[9], (output_dim,)),
    }

    X = jax.random.normal(ks[10], (B, T, input_dim), jnp.float32)
    time_ticks = jnp.broadcast_to(
        jnp.arange(T, dtype=jnp.float32)[None, :, None], (B, T, 1))
    h0 = init(ks[11], (1, B, hidden_dim), scale=1.0)   # (num_layers, B, H)

    # Parameter packing happens ONCE (not per forward call).
    slab, rows = pack_params(params, hidden_dim=hidden_dim, input_dim=input_dim,
                             time_embed_dim=time_embed_dim, output_dim=output_dim)
    forward = make_time_gru_forward(slab, rows, input_dim=input_dim,
                                    hidden_dim=hidden_dim,
                                    time_embed_dim=time_embed_dim,
                                    output_dim=output_dim)

    out = jax.block_until_ready(forward(X, time_ticks, h0))
    ref = reference_forward(X, time_ticks, h0, params)

    assert out.shape == (B, output_dim), out.shape
    # bf16 MXU operands on the GRU chain cost ~1e-3..2e-3 absolute error at these
    # magnitudes (compounds over T); with _DOT_DTYPE = jnp.float32 the kernel
    # matches the pure-f32 reference to <1e-3.
    assert jnp.allclose(out, ref, atol=5e-3, rtol=1e-3), (out, ref)
    print("KERNEL_OK")
</pallas_src>

<mosaic_0001>
module attributes {stable_mosaic.version = 11 : i64} {
  func.func @_time_gru_kernel(%arg0: i32, %arg1: memref<8x8x4xf32, #tpu.memory_space<vmem>>, %arg2: memref<8x1xf32, #tpu.memory_space<vmem>>, %arg3: memref<8x32xf32, #tpu.memory_space<vmem>>, %arg4: memref<128x128xf32, #tpu.memory_space<vmem>>, %arg5: memref<8x4xf32, #tpu.memory_space<vmem>>, %arg6: memref<8x8x96xf32, #tpu.memory_space<vmem>>) attributes {dimension_semantics = [#tpu.dimension_semantics<parallel>], iteration_bounds = array<i64: 1>, scalar_prefetch = 0 : i64, scratch_operands = 1 : i64, tpu.core_type = #tpu.core_type<tc>, window_params = [{transform_indices = @transform_0, window_bounds = array<i64: 8, 8, 4>}, {transform_indices = @transform_1, window_bounds = array<i64: 8, 1>}, {transform_indices = @transform_2, window_bounds = array<i64: 8, 32>}, {pipeline_mode = #tpu.pipeline_mode<synchronous>, transform_indices = @transform_3, window_bounds = array<i64: 128, 128>}, {transform_indices = @transform_4, window_bounds = array<i64: 8, 4>}]} {
    %c0 = arith.constant 0 : index
    %c0_0 = arith.constant 0 : index
    %0 = vector.load %arg4[%c0, %c0_0] : memref<128x128xf32, #tpu.memory_space<vmem>>, vector<32x32xf32>
    %c32 = arith.constant 32 : index
    %c0_1 = arith.constant 0 : index
    %1 = vector.load %arg4[%c32, %c0_1] : memref<128x128xf32, #tpu.memory_space<vmem>>, vector<4x96xf32>
    %c40 = arith.constant 40 : index
    %c0_2 = arith.constant 0 : index
    %2 = vector.load %arg4[%c40, %c0_2] : memref<128x128xf32, #tpu.memory_space<vmem>>, vector<32x96xf32>
    %c72 = arith.constant 72 : index
    %c0_3 = arith.constant 0 : index
    %3 = vector.load %arg4[%c72, %c0_3] : memref<128x128xf32, #tpu.memory_space<vmem>>, vector<1x8xf32>
    %c80 = arith.constant 80 : index
    %c0_4 = arith.constant 0 : index
    %4 = vector.load %arg4[%c80, %c0_4] : memref<128x128xf32, #tpu.memory_space<vmem>>, vector<32x4xf32>
    %c112 = arith.constant 112 : index
    %c0_5 = arith.constant 0 : index
    %5 = vector.load %arg4[%c112, %c0_5] : memref<128x128xf32, #tpu.memory_space<vmem>>, vector<8x4xf32>
    %c120 = arith.constant 120 : index
    %c0_6 = arith.constant 0 : index
    %6 = vector.load %arg4[%c120, %c0_6] : memref<128x128xf32, #tpu.memory_space<vmem>>, vector<1x32xf32>
    %c121 = arith.constant 121 : index
    %c0_7 = arith.constant 0 : index
    %7 = vector.load %arg4[%c121, %c0_7] : memref<128x128xf32, #tpu.memory_space<vmem>>, vector<1x96xf32>
    %c122 = arith.constant 122 : index
    %c0_8 = arith.constant 0 : index
    %8 = vector.load %arg4[%c122, %c0_8] : memref<128x128xf32, #tpu.memory_space<vmem>>, vector<1x32xf32>
    %c123 = arith.constant 123 : index
    %c0_9 = arith.constant 0 : index
    %9 = vector.load %arg4[%c123, %c0_9] : memref<128x128xf32, #tpu.memory_space<vmem>>, vector<1x8xf32>
    %c124 = arith.constant 124 : index
    %c0_10 = arith.constant 0 : index
    %10 = vector.load %arg4[%c124, %c0_10] : memref<128x128xf32, #tpu.memory_space<vmem>>, vector<1x4xf32>
    %c0_11 = arith.constant 0 : index
    %c0_12 = arith.constant 0 : index
    %c0_13 = arith.constant 0 : index
    %11 = vector.load %arg1[%c0_11, %c0_12, %c0_13] : memref<8x8x4xf32, #tpu.memory_space<vmem>>, vector<8x8x4xf32>
    %cst = arith.constant dense<0.000000e+00> : vector<8x4xf32>
    %12 = vector.multi_reduction <add>, %11, %cst [0] : vector<8x8x4xf32> to vector<8x4xf32>
    %13 = vector.shape_cast %12 : vector<8x4xf32> to vector<1x8x4xf32>
    %cst_14 = arith.constant 8.000000e+00 : f32
    %14 = vector.broadcast %cst_14 : f32 to vector<1x8x4xf32>
    %15 = arith.divf %13, %14 : vector<1x8x4xf32>
    %16 = vector.broadcast %15 : vector<1x8x4xf32> to vector<8x8x4xf32>
    %17 = arith.subf %11, %16 : vector<8x8x4xf32>
    %18 = arith.mulf %17, %17 : vector<8x8x4xf32>
    %cst_15 = arith.constant dense<0.000000e+00> : vector<8x4xf32>
    %19 = vector.multi_reduction <add>, %18, %cst_15 [0] : vector<8x8x4xf32> to vector<8x4xf32>
    %20 = vector.shape_cast %19 : vector<8x4xf32> to vector<1x8x4xf32>
    %cst_16 = arith.constant 8.000000e+00 : f32
    %21 = vector.broadcast %cst_16 : f32 to vector<1x8x4xf32>
    %22 = arith.divf %20, %21 : vector<1x8x4xf32>
    %23 = math.sqrt %22 : vector<1x8x4xf32>
    %cst_17 = arith.constant 9.99999993E-9 : f32
    %24 = vector.broadcast %cst_17 : f32 to vector<1x8x4xf32>
    %25 = arith.addf %23, %24 : vector<1x8x4xf32>
    %26 = vector.broadcast %15 : vector<1x8x4xf32> to vector<8x8x4xf32>
    %27 = arith.subf %11, %26 : vector<8x8x4xf32>
    %28 = vector.broadcast %25 : vector<1x8x4xf32> to vector<8x8x4xf32>
    %29 = arith.divf %27, %28 : vector<8x8x4xf32>
    %30 = vector.shape_cast %29 : vector<8x8x4xf32> to vector<64x4xf32>
    %31 = arith.truncf %30 : vector<64x4xf32> to vector<64x4xbf16>
    %32 = arith.truncf %1 : vector<4x96xf32> to vector<4x96xbf16>
    %cst_18 = arith.constant dense<0.000000e+00> : vector<64x96xf32>
    %33 = tpu.matmul %31, %32, %cst_18 {dimension_numbers = #tpu.dot_dimension_numbers<[1], [0], [0], [1], [0, 0, 1, 1], [], []>} : vector<64x4xbf16>, vector<4x96xbf16>, vector<64x96xf32> -> vector<64x96xf32>
    %34 = vector.broadcast %7 : vector<1x96xf32> to vector<64x96xf32>
    %35 = arith.addf %33, %34 : vector<64x96xf32>
    %36 = vector.shape_cast %35 : vector<64x96xf32> to vector<8x8x96xf32>
    %c0_19 = arith.constant 0 : index
    %c0_20 = arith.constant 0 : index
    %c0_21 = arith.constant 0 : index
    %37 = vector.load %arg6[%c0_19, %c0_20, %c0_21] : memref<8x8x96xf32, #tpu.memory_space<vmem>>, vector<8x8x96xf32>
    tpu.vector_store %arg6[%c0_19, %c0_20, %c0_21], %36 {strides = array<i32>} : memref<8x8x96xf32, #tpu.memory_space<vmem>>, vector<8x8x96xf32>,
    %c0_22 = arith.constant 0 : index
    %c0_23 = arith.constant 0 : index
    %38 = vector.load %arg3[%c0_22, %c0_23] : memref<8x32xf32, #tpu.memory_space<vmem>>, vector<8x32xf32>
    %cst_24 = arith.constant dense<0.000000e+00> : vector<8x32xf32>
    %39 = tpu.matmul %38, %0, %cst_24 {dimension_numbers = #tpu.dot_dimension_numbers<[1], [0], [0], [1], [0, 0, 1, 1], [], []>} : vector<8x32xf32>, vector<32x32xf32>, vector<8x32xf32> -> vector<8x32xf32>
    %40 = vector.broadcast %6 : vector<1x32xf32> to vector<8x32xf32>
    %41 = arith.addf %39, %40 : vector<8x32xf32>
    %42 = arith.truncf %2 : vector<32x96xf32> to vector<32x96xbf16>
    %c0_i32 = arith.constant 0 : i32
    %43 = arith.index_cast %c0_i32 : i32 to index
    %c0_25 = arith.constant 0 : index
    %c0_26 = arith.constant 0 : index
    %44 = vector.load %arg6[%43, %c0_25, %c0_26] : memref<8x8x96xf32, #tpu.memory_space<vmem>>, vector<1x8x96xf32>
    %45 = vector.shape_cast %44 : vector<1x8x96xf32> to vector<8x96xf32>
    %46 = arith.truncf %41 : vector<8x32xf32> to vector<8x32xbf16>
    %cst_27 = arith.constant dense<0.000000e+00> : vector<8x96xf32>
    %47 = tpu.matmul %46, %42, %cst_27 {dimension_numbers = #tpu.dot_dimension_numbers<[1], [0], [0], [1], [0, 0, 1, 1], [], []>} : vector<8x32xbf16>, vector<32x96xbf16>, vector<8x96xf32> -> vector<8x96xf32>
    %48 = vector.extract_strided_slice %45 {offsets = [0, 0], sizes = [8, 32], strides = [1, 1]} : vector<8x96xf32> to vector<8x32xf32>
    %49 = vector.extract_strided_slice %47 {offsets = [0, 0], sizes = [8, 32], strides = [1, 1]} : vector<8x96xf32> to vector<8x32xf32>
    %50 = arith.addf %48, %49 : vector<8x32xf32>
    %51 = arith.negf %50 : vector<8x32xf32>
    %52 = math.exp %51 : vector<8x32xf32>
    %cst_28 = arith.constant 1.000000e+00 : f32
    %53 = vector.broadcast %cst_28 : f32 to vector<8x32xf32>
    %54 = arith.addf %53, %52 : vector<8x32xf32>
    %55 = arith.divf %53, %54 : vector<8x32xf32>
    %56 = vector.extract_strided_slice %45 {offsets = [0, 32], sizes = [8, 32], strides = [1, 1]} : vector<8x96xf32> to vector<8x32xf32>
    %57 = vector.extract_strided_slice %47 {offsets = [0, 32], sizes = [8, 32], strides = [1, 1]} : vector<8x96xf32> to vector<8x32xf32>
    %58 = arith.addf %56, %57 : vector<8x32xf32>
    %59 = arith.negf %58 : vector<8x32xf32>
    %60 = math.exp %59 : vector<8x32xf32>
    %cst_29 = arith.constant 1.000000e+00 : f32
    %61 = vector.broadcast %cst_29 : f32 to vector<8x32xf32>
    %62 = arith.addf %61, %60 : vector<8x32xf32>
    %63 = arith.divf %61, %62 : vector<8x32xf32>
    %64 = vector.extract_strided_slice %45 {offsets = [0, 64], sizes = [8, 32], strides = [1, 1]} : vector<8x96xf32> to vector<8x32xf32>
    %65 = vector.extract_strided_slice %47 {offsets = [0, 64], sizes = [8, 32], strides = [1, 1]} : vector<8x96xf32> to vector<8x32xf32>
    %66 = vector.broadcast %8 : vector<1x32xf32> to vector<8x32xf32>
    %67 = arith.addf %65, %66 : vector<8x32xf32>
    %68 = arith.mulf %55, %67 : vector<8x32xf32>
    %69 = arith.addf %64, %68 : vector<8x32xf32>
    %70 = math.tanh %69 : vector<8x32xf32>
    %71 = arith.subf %41, %70 : vector<8x32xf32>
    %72 = arith.mulf %63, %71 : vector<8x32xf32>
    %73 = arith.addf %70, %72 : vector<8x32xf32>
    %c1_i32 = arith.constant 1 : i32
    %74 = arith.index_cast %c1_i32 : i32 to index
    %c0_30 = arith.constant 0 : index
    %c0_31 = arith.constant 0 : index
    %75 = vector.load %arg6[%74, %c0_30, %c0_31] : memref<8x8x96xf32, #tpu.memory_space<vmem>>, vector<1x8x96xf32>
    %76 = vector.shape_cast %75 : vector<1x8x96xf32> to vector<8x96xf32>
    %77 = arith.truncf %73 : vector<8x32xf32> to vector<8x32xbf16>
    %cst_32 = arith.constant dense<0.000000e+00> : vector<8x96xf32>
    %78 = tpu.matmul %77, %42, %cst_32 {dimension_numbers = #tpu.dot_dimension_numbers<[1], [0], [0], [1], [0, 0, 1, 1], [], []>} : vector<8x32xbf16>, vector<32x96xbf16>, vector<8x96xf32> -> vector<8x96xf32>
    %79 = vector.extract_strided_slice %76 {offsets = [0, 0], sizes = [8, 32], strides = [1, 1]} : vector<8x96xf32> to vector<8x32xf32>
    %80 = vector.extract_strided_slice %78 {offsets = [0, 0], sizes = [8, 32], strides = [1, 1]} : vector<8x96xf32> to vector<8x32xf32>
    %81 = arith.addf %79, %80 : vector<8x32xf32>
    %82 = arith.negf %81 : vector<8x32xf32>
    %83 = math.exp %82 : vector<8x32xf32>
    %cst_33 = arith.constant 1.000000e+00 : f32
    %84 = vector.broadcast %cst_33 : f32 to vector<8x32xf32>
    %85 = arith.addf %84, %83 : vector<8x32xf32>
    %86 = arith.divf %84, %85 : vector<8x32xf32>
    %87 = vector.extract_strided_slice %76 {offsets = [0, 32], sizes = [8, 32], strides = [1, 1]} : vector<8x96xf32> to vector<8x32xf32>
    %88 = vector.extract_strided_slice %78 {offsets = [0, 32], sizes = [8, 32], strides = [1, 1]} : vector<8x96xf32> to vector<8x32xf32>
    %89 = arith.addf %87, %88 : vector<8x32xf32>
    %90 = arith.negf %89 : vector<8x32xf32>
    %91 = math.exp %90 : vector<8x32xf32>
    %cst_34 = arith.constant 1.000000e+00 : f32
    %92 = vector.broadcast %cst_34 : f32 to vector<8x32xf32>
    %93 = arith.addf %92, %91 : vector<8x32xf32>
    %94 = arith.divf %92, %93 : vector<8x32xf32>
    %95 = vector.extract_strided_slice %76 {offsets = [0, 64], sizes = [8, 32], strides = [1, 1]} : vector<8x96xf32> to vector<8x32xf32>
    %96 = vector.extract_strided_slice %78 {offsets = [0, 64], sizes = [8, 32], strides = [1, 1]} : vector<8x96xf32> to vector<8x32xf32>
    %97 = vector.broadcast %8 : vector<1x32xf32> to vector<8x32xf32>
    %98 = arith.addf %96, %97 : vector<8x32xf32>
    %99 = arith.mulf %86, %98 : vector<8x32xf32>
    %100 = arith.addf %95, %99 : vector<8x32xf32>
    %101 = math.tanh %100 : vector<8x32xf32>
    %102 = arith.subf %73, %101 : vector<8x32xf32>
    %103 = arith.mulf %94, %102 : vector<8x32xf32>
    %104 = arith.addf %101, %103 : vector<8x32xf32>
    %c2_i32 = arith.constant 2 : i32
    %105 = arith.index_cast %c2_i32 : i32 to index
    %c0_35 = arith.constant 0 : index
    %c0_36 = arith.constant 0 : index
    %106 = vector.load %arg6[%105, %c0_35, %c0_36] : memref<8x8x96xf32, #tpu.memory_space<vmem>>, vector<1x8x96xf32>
    %107 = vector.shape_cast %106 : vector<1x8x96xf32> to vector<8x96xf32>
    %108 = arith.truncf %104 : vector<8x32xf32> to vector<8x32xbf16>
    %cst_37 = arith.constant dense<0.000000e+00> : vector<8x96xf32>
    %109 = tpu.matmul %108, %42, %cst_37 {dimension_numbers = #tpu.dot_dimension_numbers<[1], [0], [0], [1], [0, 0, 1, 1], [], []>} : vector<8x32xbf16>, vector<32x96xbf16>, vector<8x96xf32> -> vector<8x96xf32>
    %110 = vector.extract_strided_slice %107 {offsets = [0, 0], sizes = [8, 32], strides = [1, 1]} : vector<8x96xf32> to vector<8x32xf32>
    %111 = vector.extract_strided_slice %109 {offsets = [0, 0], sizes = [8, 32], strides = [1, 1]} : vector<8x96xf32> to vector<8x32xf32>
    %112 = arith.addf %110, %111 : vector<8x32xf32>
    %113 = arith.negf %112 : vector<8x32xf32>
    %114 = math.exp %113 : vector<8x32xf32>
    %cst_38 = arith.constant 1.000000e+00 : f32
    %115 = vector.broadcast %cst_38 : f32 to vector<8x32xf32>
    %116 = arith.addf %115, %114 : vector<8x32xf32>
    %117 = arith.divf %115, %116 : vector<8x32xf32>
    %118 = vector.extract_strided_slice %107 {offsets = [0, 32], sizes = [8, 32], strides = [1, 1]} : vector<8x96xf32> to vector<8x32xf32>
    %119 = vector.extract_strided_slice %109 {offsets = [0, 32], sizes = [8, 32], strides = [1, 1]} : vector<8x96xf32> to vector<8x32xf32>
    %120 = arith.addf %118, %119 : vector<8x32xf32>
    %121 = arith.negf %120 : vector<8x32xf32>
    %122 = math.exp %121 : vector<8x32xf32>
    %cst_39 = arith.constant 1.000000e+00 : f32
    %123 = vector.broadcast %cst_39 : f32 to vector<8x32xf32>
    %124 = arith.addf %123, %122 : vector<8x32xf32>
    %125 = arith.divf %123, %124 : vector<8x32xf32>
    %126 = vector.extract_strided_slice %107 {offsets = [0, 64], sizes = [8, 32], strides = [1, 1]} : vector<8x96xf32> to vector<8x32xf32>
    %127 = vector.extract_strided_slice %109 {offsets = [0, 64], sizes = [8, 32], strides = [1, 1]} : vector<8x96xf32> to vector<8x32xf32>
    %128 = vector.broadcast %8 : vector<1x32xf32> to vector<8x32xf32>
    %129 = arith.addf %127, %128 : vector<8x32xf32>
    %130 = arith.mulf %117, %129 : vector<8x32xf32>
    %131 = arith.addf %126, %130 : vector<8x32xf32>
    %132 = math.tanh %131 : vector<8x32xf32>
    %133 = arith.subf %104, %132 : vector<8x32xf32>
    %134 = arith.mulf %125, %133 : vector<8x32xf32>
    %135 = arith.addf %132, %134 : vector<8x32xf32>
    %c3_i32 = arith.constant 3 : i32
    %136 = arith.index_cast %c3_i32 : i32 to index
    %c0_40 = arith.constant 0 : index
    %c0_41 = arith.constant 0 : index
    %137 = vector.load %arg6[%136, %c0_40, %c0_41] : memref<8x8x96xf32, #tpu.memory_space<vmem>>, vector<1x8x96xf32>
    %138 = vector.shape_cast %137 : vector<1x8x96xf32> to vector<8x96xf32>
    %139 = arith.truncf %135 : vector<8x32xf32> to vector<8x32xbf16>
    %cst_42 = arith.constant dense<0.000000e+00> : vector<8x96xf32>
    %140 = tpu.matmul %139, %42, %cst_42 {dimension_numbers = #tpu.dot_dimension_numbers<[1], [0], [0], [1], [0, 0, 1, 1], [], []>} : vector<8x32xbf16>, vector<32x96xbf16>, vector<8x96xf32> -> vector<8x96xf32>
    %141 = vector.extract_strided_slice %138 {offsets = [0, 0], sizes = [8, 32], strides = [1, 1]} : vector<8x96xf32> to vector<8x32xf32>
    %142 = vector.extract_strided_slice %140 {offsets = [0, 0], sizes = [8, 32], strides = [1, 1]} : vector<8x96xf32> to vector<8x32xf32>
    %143 = arith.addf %141, %142 : vector<8x32xf32>
    %144 = arith.negf %143 : vector<8x32xf32>
    %145 = math.exp %144 : vector<8x32xf32>
    %cst_43 = arith.constant 1.000000e+00 : f32
    %146 = vector.broadcast %cst_43 : f32 to vector<8x32xf32>
    %147 = arith.addf %146, %145 : vector<8x32xf32>
    %148 = arith.divf %146, %147 : vector<8x32xf32>
    %149 = vector.extract_strided_slice %138 {offsets = [0, 32], sizes = [8, 32], strides = [1, 1]} : vector<8x96xf32> to vector<8x32xf32>
    %150 = vector.extract_strided_slice %140 {offsets = [0, 32], sizes = [8, 32], strides = [1, 1]} : vector<8x96xf32> to vector<8x32xf32>
    %151 = arith.addf %149, %150 : vector<8x32xf32>
    %152 = arith.negf %151 : vector<8x32xf32>
    %153 = math.exp %152 : vector<8x32xf32>
    %cst_44 = arith.constant 1.000000e+00 : f32
    %154 = vector.broadcast %cst_44 : f32 to vector<8x32xf32>
    %155 = arith.addf %154, %153 : vector<8x32xf32>
    %156 = arith.divf %154, %155 : vector<8x32xf32>
    %157 = vector.extract_strided_slice %138 {offsets = [0, 64], sizes = [8, 32], strides = [1, 1]} : vector<8x96xf32> to vector<8x32xf32>
    %158 = vector.extract_strided_slice %140 {offsets = [0, 64], sizes = [8, 32], strides = [1, 1]} : vector<8x96xf32> to vector<8x32xf32>
    %159 = vector.broadcast %8 : vector<1x32xf32> to vector<8x32xf32>
    %160 = arith.addf %158, %159 : vector<8x32xf32>
    %161 = arith.mulf %148, %160 : vector<8x32xf32>
    %162 = arith.addf %157, %161 : vector<8x32xf32>
    %163 = math.tanh %162 : vector<8x32xf32>
    %164 = arith.subf %135, %163 : vector<8x32xf32>
    %165 = arith.mulf %156, %164 : vector<8x32xf32>
    %166 = arith.addf %163, %165 : vector<8x32xf32>
    %c4_i32 = arith.constant 4 : i32
    %167 = arith.index_cast %c4_i32 : i32 to index
    %c0_45 = arith.constant 0 : index
    %c0_46 = arith.constant 0 : index
    %168 = vector.load %arg6[%167, %c0_45, %c0_46] : memref<8x8x96xf32, #tpu.memory_space<vmem>>, vector<1x8x96xf32>
    %169 = vector.shape_cast %168 : vector<1x8x96xf32> to vector<8x96xf32>
    %170 = arith.truncf %166 : vector<8x32xf32> to vector<8x32xbf16>
    %cst_47 = arith.constant dense<0.000000e+00> : vector<8x96xf32>
    %171 = tpu.matmul %170, %42, %cst_47 {dimension_numbers = #tpu.dot_dimension_numbers<[1], [0], [0], [1], [0, 0, 1, 1], [], []>} : vector<8x32xbf16>, vector<32x96xbf16>, vector<8x96xf32> -> vector<8x96xf32>
    %172 = vector.extract_strided_slice %169 {offsets = [0, 0], sizes = [8, 32], strides = [1, 1]} : vector<8x96xf32> to vector<8x32xf32>
    %173 = vector.extract_strided_slice %171 {offsets = [0, 0], sizes = [8, 32], strides = [1, 1]} : vector<8x96xf32> to vector<8x32xf32>
    %174 = arith.addf %172, %173 : vector<8x32xf32>
    %175 = arith.negf %174 : vector<8x32xf32>
    %176 = math.exp %175 : vector<8x32xf32>
    %cst_48 = arith.constant 1.000000e+00 : f32
    %177 = vector.broadcast %cst_48 : f32 to vector<8x32xf32>
    %178 = arith.addf %177, %176 : vector<8x32xf32>
    %179 = arith.divf %177, %178 : vector<8x32xf32>
    %180 = vector.extract_strided_slice %169 {offsets = [0, 32], sizes = [8, 32], strides = [1, 1]} : vector<8x96xf32> to vector<8x32xf32>
    %181 = vector.extract_strided_slice %171 {offsets = [0, 32], sizes = [8, 32], strides = [1, 1]} : vector<8x96xf32> to vector<8x32xf32>
    %182 = arith.addf %180, %181 : vector<8x32xf32>
    %183 = arith.negf %182 : vector<8x32xf32>
    %184 = math.exp %183 : vector<8x32xf32>
    %cst_49 = arith.constant 1.000000e+00 : f32
    %185 = vector.broadcast %cst_49 : f32 to vector<8x32xf32>
    %186 = arith.addf %185, %184 : vector<8x32xf32>
    %187 = arith.divf %185, %186 : vector<8x32xf32>
    %188 = vector.extract_strided_slice %169 {offsets = [0, 64], sizes = [8, 32], strides = [1, 1]} : vector<8x96xf32> to vector<8x32xf32>
    %189 = vector.extract_strided_slice %171 {offsets = [0, 64], sizes = [8, 32], strides = [1, 1]} : vector<8x96xf32> to vector<8x32xf32>
    %190 = vector.broadcast %8 : vector<1x32xf32> to vector<8x32xf32>
    %191 = arith.addf %189, %190 : vector<8x32xf32>
    %192 = arith.mulf %179, %191 : vector<8x32xf32>
    %193 = arith.addf %188, %192 : vector<8x32xf32>
    %194 = math.tanh %193 : vector<8x32xf32>
    %195 = arith.subf %166, %194 : vector<8x32xf32>
    %196 = arith.mulf %187, %195 : vector<8x32xf32>
    %197 = arith.addf %194, %196 : vector<8x32xf32>
    %c5_i32 = arith.constant 5 : i32
    %198 = arith.index_cast %c5_i32 : i32 to index
    %c0_50 = arith.constant 0 : index
    %c0_51 = arith.constant 0 : index
    %199 = vector.load %arg6[%198, %c0_50, %c0_51] : memref<8x8x96xf32, #tpu.memory_space<vmem>>, vector<1x8x96xf32>
    %200 = vector.shape_cast %199 : vector<1x8x96xf32> to vector<8x96xf32>
    %201 = arith.truncf %197 : vector<8x32xf32> to vector<8x32xbf16>
    %cst_52 = arith.constant dense<0.000000e+00> : vector<8x96xf32>
    %202 = tpu.matmul %201, %42, %cst_52 {dimension_numbers = #tpu.dot_dimension_numbers<[1], [0], [0], [1], [0, 0, 1, 1], [], []>} : vector<8x32xbf16>, vector<32x96xbf16>, vector<8x96xf32> -> vector<8x96xf32>
    %203 = vector.extract_strided_slice %200 {offsets = [0, 0], sizes = [8, 32], strides = [1, 1]} : vector<8x96xf32> to vector<8x32xf32>
    %204 = vector.extract_strided_slice %202 {offsets = [0, 0], sizes = [8, 32], strides = [1, 1]} : vector<8x96xf32> to vector<8x32xf32>
    %205 = arith.addf %203, %204 : vector<8x32xf32>
    %206 = arith.negf %205 : vector<8x32xf32>
    %207 = math.exp %206 : vector<8x32xf32>
    %cst_53 = arith.constant 1.000000e+00 : f32
    %208 = vector.broadcast %cst_53 : f32 to vector<8x32xf32>
    %209 = arith.addf %208, %207 : vector<8x32xf32>
    %210 = arith.divf %208, %209 : vector<8x32xf32>
    %211 = vector.extract_strided_slice %200 {offsets = [0, 32], sizes = [8, 32], strides = [1, 1]} : vector<8x96xf32> to vector<8x32xf32>
    %212 = vector.extract_strided_slice %202 {offsets = [0, 32], sizes = [8, 32], strides = [1, 1]} : vector<8x96xf32> to vector<8x32xf32>
    %213 = arith.addf %211, %212 : vector<8x32xf32>
    %214 = arith.negf %213 : vector<8x32xf32>
    %215 = math.exp %214 : vector<8x32xf32>
    %cst_54 = arith.constant 1.000000e+00 : f32
    %216 = vector.broadcast %cst_54 : f32 to vector<8x32xf32>
    %217 = arith.addf %216, %215 : vector<8x32xf32>
    %218 = arith.divf %216, %217 : vector<8x32xf32>
    %219 = vector.extract_strided_slice %200 {offsets = [0, 64], sizes = [8, 32], strides = [1, 1]} : vector<8x96xf32> to vector<8x32xf32>
    %220 = vector.extract_strided_slice %202 {offsets = [0, 64], sizes = [8, 32], strides = [1, 1]} : vector<8x96xf32> to vector<8x32xf32>
    %221 = vector.broadcast %8 : vector<1x32xf32> to vector<8x32xf32>
    %222 = arith.addf %220, %221 : vector<8x32xf32>
    %223 = arith.mulf %210, %222 : vector<8x32xf32>
    %224 = arith.addf %219, %223 : vector<8x32xf32>
    %225 = math.tanh %224 : vector<8x32xf32>
    %226 = arith.subf %197, %225 : vector<8x32xf32>
    %227 = arith.mulf %218, %226 : vector<8x32xf32>
    %228 = arith.addf %225, %227 : vector<8x32xf32>
    %c6_i32 = arith.constant 6 : i32
    %229 = arith.index_cast %c6_i32 : i32 to index
    %c0_55 = arith.constant 0 : index
    %c0_56 = arith.constant 0 : index
    %230 = vector.load %arg6[%229, %c0_55, %c0_56] : memref<8x8x96xf32, #tpu.memory_space<vmem>>, vector<1x8x96xf32>
    %231 = vector.shape_cast %230 : vector<1x8x96xf32> to vector<8x96xf32>
    %232 = arith.truncf %228 : vector<8x32xf32> to vector<8x32xbf16>
    %cst_57 = arith.constant dense<0.000000e+00> : vector<8x96xf32>
    %233 = tpu.matmul %232, %42, %cst_57 {dimension_numbers = #tpu.dot_dimension_numbers<[1], [0], [0], [1], [0, 0, 1, 1], [], []>} : vector<8x32xbf16>, vector<32x96xbf16>, vector<8x96xf32> -> vector<8x96xf32>
    %234 = vector.extract_strided_slice %231 {offsets = [0, 0], sizes = [8, 32], strides = [1, 1]} : vector<8x96xf32> to vector<8x32xf32>
    %235 = vector.extract_strided_slice %233 {offsets = [0, 0], sizes = [8, 32], strides = [1, 1]} : vector<8x96xf32> to vector<8x32xf32>
    %236 = arith.addf %234, %235 : vector<8x32xf32>
    %237 = arith.negf %236 : vector<8x32xf32>
    %238 = math.exp %237 : vector<8x32xf32>
    %cst_58 = arith.constant 1.000000e+00 : f32
    %239 = vector.broadcast %cst_58 : f32 to vector<8x32xf32>
    %240 = arith.addf %239, %238 : vector<8x32xf32>
    %241 = arith.divf %239, %240 : vector<8x32xf32>
    %242 = vector.extract_strided_slice %231 {offsets = [0, 32], sizes = [8, 32], strides = [1, 1]} : vector<8x96xf32> to vector<8x32xf32>
    %243 = vector.extract_strided_slice %233 {offsets = [0, 32], sizes = [8, 32], strides = [1, 1]} : vector<8x96xf32> to vector<8x32xf32>
    %244 = arith.addf %242, %243 : vector<8x32xf32>
    %245 = arith.negf %244 : vector<8x32xf32>
    %246 = math.exp %245 : vector<8x32xf32>
    %cst_59 = arith.constant 1.000000e+00 : f32
    %247 = vector.broadcast %cst_59 : f32 to vector<8x32xf32>
    %248 = arith.addf %247, %246 : vector<8x32xf32>
    %249 = arith.divf %247, %248 : vector<8x32xf32>
    %250 = vector.extract_strided_slice %231 {offsets = [0, 64], sizes = [8, 32], strides = [1, 1]} : vector<8x96xf32> to vector<8x32xf32>
    %251 = vector.extract_strided_slice %233 {offsets = [0, 64], sizes = [8, 32], strides = [1, 1]} : vector<8x96xf32> to vector<8x32xf32>
    %252 = vector.broadcast %8 : vector<1x32xf32> to vector<8x32xf32>
    %253 = arith.addf %251, %252 : vector<8x32xf32>
    %254 = arith.mulf %241, %253 : vector<8x32xf32>
    %255 = arith.addf %250, %254 : vector<8x32xf32>
    %256 = math.tanh %255 : vector<8x32xf32>
    %257 = arith.subf %228, %256 : vector<8x32xf32>
    %258 = arith.mulf %249, %257 : vector<8x32xf32>
    %259 = arith.addf %256, %258 : vector<8x32xf32>
    %c7_i32 = arith.constant 7 : i32
    %260 = arith.index_cast %c7_i32 : i32 to index
    %c0_60 = arith.constant 0 : index
    %c0_61 = arith.constant 0 : index
    %261 = vector.load %arg6[%260, %c0_60, %c0_61] : memref<8x8x96xf32, #tpu.memory_space<vmem>>, vector<1x8x96xf32>
    %262 = vector.shape_cast %261 : vector<1x8x96xf32> to vector<8x96xf32>
    %263 = arith.truncf %259 : vector<8x32xf32> to vector<8x32xbf16>
    %cst_62 = arith.constant dense<0.000000e+00> : vector<8x96xf32>
    %264 = tpu.matmul %263, %42, %cst_62 {dimension_numbers = #tpu.dot_dimension_numbers<[1], [0], [0], [1], [0, 0, 1, 1], [], []>} : vector<8x32xbf16>, vector<32x96xbf16>, vector<8x96xf32> -> vector<8x96xf32>
    %265 = vector.extract_strided_slice %262 {offsets = [0, 0], sizes = [8, 32], strides = [1, 1]} : vector<8x96xf32> to vector<8x32xf32>
    %266 = vector.extract_strided_slice %264 {offsets = [0, 0], sizes = [8, 32], strides = [1, 1]} : vector<8x96xf32> to vector<8x32xf32>
    %267 = arith.addf %265, %266 : vector<8x32xf32>
    %268 = arith.negf %267 : vector<8x32xf32>
    %269 = math.exp %268 : vector<8x32xf32>
    %cst_63 = arith.constant 1.000000e+00 : f32
    %270 = vector.broadcast %cst_63 : f32 to vector<8x32xf32>
    %271 = arith.addf %270, %269 : vector<8x32xf32>
    %272 = arith.divf %270, %271 : vector<8x32xf32>
    %273 = vector.extract_strided_slice %262 {offsets = [0, 32], sizes = [8, 32], strides = [1, 1]} : vector<8x96xf32> to vector<8x32xf32>
    %274 = vector.extract_strided_slice %264 {offsets = [0, 32], sizes = [8, 32], strides = [1, 1]} : vector<8x96xf32> to vector<8x32xf32>
    %275 = arith.addf %273, %274 : vector<8x32xf32>
    %276 = arith.negf %275 : vector<8x32xf32>
    %277 = math.exp %276 : vector<8x32xf32>
    %cst_64 = arith.constant 1.000000e+00 : f32
    %278 = vector.broadcast %cst_64 : f32 to vector<8x32xf32>
    %279 = arith.addf %278, %277 : vector<8x32xf32>
    %280 = arith.divf %278, %279 : vector<8x32xf32>
    %281 = vector.extract_strided_slice %262 {offsets = [0, 64], sizes = [8, 32], strides = [1, 1]} : vector<8x96xf32> to vector<8x32xf32>
    %282 = vector.extract_strided_slice %264 {offsets = [0, 64], sizes = [8, 32], strides = [1, 1]} : vector<8x96xf32> to vector<8x32xf32>
    %283 = vector.broadcast %8 : vector<1x32xf32> to vector<8x32xf32>
    %284 = arith.addf %282, %283 : vector<8x32xf32>
    %285 = arith.mulf %272, %284 : vector<8x32xf32>
    %286 = arith.addf %281, %285 : vector<8x32xf32>
    %287 = math.tanh %286 : vector<8x32xf32>
    %288 = arith.subf %259, %287 : vector<8x32xf32>
    %289 = arith.mulf %280, %288 : vector<8x32xf32>
    %290 = arith.addf %287, %289 : vector<8x32xf32>
    %c8_i32 = arith.constant 8 : i32
    %c0_65 = arith.constant 0 : index
    %c0_66 = arith.constant 0 : index
    %291 = vector.load %arg2[%c0_65, %c0_66] : memref<8x1xf32, #tpu.memory_space<vmem>>, vector<8x1xf32>
    %292 = vector.broadcast %291 : vector<8x1xf32> to vector<8x8xf32>
    %293 = vector.broadcast %3 : vector<1x8xf32> to vector<8x8xf32>
    %294 = arith.mulf %292, %293 : vector<8x8xf32>
    %295 = vector.broadcast %9 : vector<1x8xf32> to vector<8x8xf32>
    %296 = arith.addf %294, %295 : vector<8x8xf32>
    %297 = tpu.iota {dimensions = array<i32: 1>} : vector<8x8xi32>
    %c0_i32_67 = arith.constant 0 : i32
    %298 = vector.broadcast %c0_i32_67 : i32 to vector<8x8xi32>
    %299 = arith.cmpi eq, %297, %298 : vector<8x8xi32>
    %300 = math.sin %296 : vector<8x8xf32>
    %301 = arith.select %299, %296, %300 : vector<8x8xi1>, vector<8x8xf32>
    %cst_68 = arith.constant dense<0.000000e+00> : vector<8x4xf32>
    %302 = tpu.matmul %290, %4, %cst_68 {dimension_numbers = #tpu.dot_dimension_numbers<[1], [0], [0], [1], [0, 0, 1, 1], [], []>} : vector<8x32xf32>, vector<32x4xf32>, vector<8x4xf32> -> vector<8x4xf32>
    %cst_69 = arith.constant dense<0.000000e+00> : vector<8x4xf32>
    %303 = tpu.matmul %301, %5, %cst_69 {dimension_numbers = #tpu.dot_dimension_numbers<[1], [0], [0], [1], [0, 0, 1, 1], [], []>} : vector<8x8xf32>, vector<8x4xf32>, vector<8x4xf32> -> vector<8x4xf32>
    %304 = arith.addf %302, %303 : vector<8x4xf32>
    %305 = vector.broadcast %10 : vector<1x4xf32> to vector<8x4xf32>
    %306 = arith.addf %304, %305 : vector<8x4xf32>
    %307 = vector.shape_cast %25 : vector<1x8x4xf32> to vector<8x4xf32>
    %308 = arith.mulf %306, %307 : vector<8x4xf32>
    %309 = vector.shape_cast %15 : vector<1x8x4xf32> to vector<8x4xf32>
    %310 = arith.addf %308, %309 : vector<8x4xf32>
    %c0_70 = arith.constant 0 : index
    %c0_71 = arith.constant 0 : index
    %311 = vector.load %arg5[%c0_70, %c0_71] : memref<8x4xf32, #tpu.memory_space<vmem>>, vector<8x4xf32>
    tpu.vector_store %arg5[%c0_70, %c0_71], %310 {strides = array<i32>} : memref<8x4xf32, #tpu.memory_space<vmem>>, vector<8x4xf32>,
    return
  }
  func.func @transform_0(%arg0: i32) -> (i32, i32, i32) {
    %c0_i32 = arith.constant 0 : i32
    %c0_i32_0 = arith.constant 0 : i32
    %c0_i32_1 = arith.constant 0 : i32
    return %c0_i32, %arg0, %c0_i32_0 : i32, i32, i32
  }
  func.func @transform_1(%arg0: i32) -> (i32, i32) {
    %c0_i32 = arith.constant 0 : i32
    %c0_i32_0 = arith.constant 0 : i32
    return %arg0, %c0_i32 : i32, i32
  }
  func.func @transform_2(%arg0: i32) -> (i32, i32) {
    %c0_i32 = arith.constant 0 : i32
    %c0_i32_0 = arith.constant 0 : i32
    return %arg0, %c0_i32 : i32, i32
  }
  func.func @transform_3(%arg0: i32) -> (i32, i32) {
    %c0_i32 = arith.constant 0 : i32
    %c0_i32_0 = arith.constant 0 : i32
    %c0_i32_1 = arith.constant 0 : i32
    return %c0_i32, %c0_i32_0 : i32, i32
  }
  func.func @transform_4(%arg0: i32) -> (i32, i32) {
    %c0_i32 = arith.constant 0 : i32
    %c0_i32_0 = arith.constant 0 : i32
    return %arg0, %c0_i32 : i32, i32
  }
}

</mosaic_0001>

<llo_original>
// kernel: forward.1
$region0: #{forward.1}
  #allocation0 [shape = 'u32[]', space=smem, size = 0x4, offset = 0x4, fixed_abs, tag = 'smem constant byte address 0x4 - core index']
  #allocation1 [shape = 'u32[72,128]{1,0:T(1,128)}', space=vmem, size = 0x9000, scoped, tag = 'internal scratch']
  #allocation2 [shape = 'f32[8,8,96]{2,1,0:T(8,128)}', space=vmem, size = 0x8000, scoped, tag = 'scratch operand']
  %s0 = inlined_call_operand.vmem [shape: f32[8,8,4], index: 0, kind: input, shape index: {}]
  %s1 = inlined_call_operand.vmem [shape: f32[8,1], index: 1, kind: input, shape index: {}]
  %s2 = inlined_call_operand.vmem [shape: f32[8,32], index: 2, kind: input, shape index: {}]
  %s3 = inlined_call_operand.vmem [shape: f32[128,128], index: 3, kind: input, shape index: {}]
  %s4 = inlined_call_operand.vmem [shape: f32[8,4], index: 4, kind: output, shape index: {}]
  %s5 = sld [smem:[#allocation0]]
  $region26: #{forward.1} parent=0
    _
  %s7 = ssub.s32 1, %s5
  %s8 = scalar_select 0, %s7, %s5
  // Predicated region
  $region2: #{forward.1} parent=0 // pred_check
    _
  $region3: #{forward.1} parent=0 // pred_check_branch
    %10 = sbr.rel (0) target = $region5
  $region4: #{forward.1} parent=0 // pred_region
    _
  $region5: #{forward.1} parent=0 // pred_fallthru
    _
  // Predicated region
  $region6: #{forward.1} parent=0 // pred_check
    _
  $region7: #{forward.1} parent=0 // pred_check_branch
    %12 = sbr.rel (0) target = $region9
  $region8: #{forward.1} parent=0 // pred_region
    _
  $region9: #{forward.1} parent=0 // pred_fallthru
    _
  // Predicated region
  $region10: #{forward.1} parent=0 // pred_check
    _
  $region11: #{forward.1} parent=0 // pred_check_branch
    %14 = sbr.rel (0) target = $region13
  $region12: #{forward.1} parent=0 // pred_region
    _
  $region13: #{forward.1} parent=0 // pred_fallthru
    _
  // Predicated region
  $region14: #{forward.1} parent=0 // pred_check
    _
  $region15: #{forward.1} parent=0 // pred_check_branch
    %16 = sbr.rel (0) target = $region17
  $region16: #{forward.1} parent=0 // pred_region
    _
  $region17: #{forward.1} parent=0 // pred_fallthru
    _
  %v18 = vld [vmem:[%s3] sm:$0xff]
  %v19 = vld [vmem:[%s3 + $0x8] sm:$0xff]
  %v20 = vld [vmem:[%s3 + $0x10] sm:$0xff]
  %v21 = vld [vmem:[%s3 + $0x18] sm:$0xff]
  %v22 = vld [vmem:[%s3 + $0x20] sm:$0xf]
  %v23 = vld [vmem:[%s3 + $0x28] sm:$0xff]
  %v24 = vld [vmem:[%s3 + $0x30] sm:$0xff]
  %v25 = vld [vmem:[%s3 + $0x38] sm:$0xff]
  %v26 = vld [vmem:[%s3 + $0x40] sm:$0xff]
  %v27 = vld [vmem:[%s3 + $0x48] sm:$0x1]
  %v28 = vld [vmem:[%s3 + $0x50] sm:$0xff]
  %v29 = vld [vmem:[%s3 + $0x58] sm:$0xff]
  %v30 = vld [vmem:[%s3 + $0x60] sm:$0xff]
  %v31 = vld [vmem:[%s3 + $0x68] sm:$0xff]
  %v32 = vld [vmem:[%s3 + $0x70] sm:$0xff]
  %v33 = vld [vmem:[%s3 + $0x78] sm:$0x1]
  %v34 = vld [vmem:[%s3 + $0x79] sm:$0x1]
  %v35 = vld [vmem:[%s3 + $0x7a] sm:$0x1]
  %v36 = vld [vmem:[%s3 + $0x7b] sm:$0x1]
  %v37 = vld [vmem:[%s3 + $0x7c] sm:$0x1]
  %v38 = vld [vmem:[%s0] sm:$0xff]
  %v39 = vld [vmem:[%s0 + $0x8] sm:$0xff]
  %v40 = vld [vmem:[%s0 + $0x10] sm:$0xff]
  %v41 = vld [vmem:[%s0 + $0x18] sm:$0xff]
  %v42 = vld [vmem:[%s0 + $0x20] sm:$0xff]
  %v43 = vld [vmem:[%s0 + $0x28] sm:$0xff]
  %v44 = vld [vmem:[%s0 + $0x30] sm:$0xff]
  %v45 = vld [vmem:[%s0 + $0x38] sm:$0xff]
  %vm46 = vcmask 31744
  %v47 = vsel %vm46, %v38, 0.0
  %v48 = vsel %vm46, %v39, 0.0
  %v49 = vadd.f32 %v47, %v48
  %v50 = vsel %vm46, %v40, 0.0
  %v51 = vadd.f32 %v49, %v50
  %v52 = vsel %vm46, %v41, 0.0
  %v53 = vadd.f32 %v51, %v52
  %v54 = vsel %vm46, %v42, 0.0
  %v55 = vadd.f32 %v53, %v54
  %v56 = vsel %vm46, %v43, 0.0
  %v57 = vadd.f32 %v55, %v56
  %v58 = vsel %vm46, %v44, 0.0
  %v59 = vadd.f32 %v57, %v58
  %v60 = vsel %vm46, %v45, 0.0
  %v61 = vadd.f32 %v59, %v60
  %v62 = vrcp.pop 8.0
  %v63 = vmul.f32 8.0, %v62
  %v64 = vsub.f32 1.0, %v63
  %v65 = vmul.f32 %v62, %v64
  %v66 = vadd.f32 %v62, %v65
  %vm67 = vweird.f32 %v62
  %v68 = vsel %vm67, %v62, %v66
  %v69 = vmul.f32 %v61, %v68
  %v70 = vsub.f32 %v38, %v69
  %v71 = vsub.f32 %v39, %v69
  %v72 = vsub.f32 %v40, %v69
  %v73 = vsub.f32 %v41, %v69
  %v74 = vsub.f32 %v42, %v69
  %v75 = vsub.f32 %v43, %v69
  %v76 = vsub.f32 %v44, %v69
  %v77 = vsub.f32 %v45, %v69
  %v78 = vmul.f32 %v70, %v70
  %v79 = vmul.f32 %v71, %v71
  %v80 = vmul.f32 %v72, %v72
  %v81 = vmul.f32 %v73, %v73
  %v82 = vmul.f32 %v74, %v74
  %v83 = vmul.f32 %v75, %v75
  %v84 = vmul.f32 %v76, %v76
  %v85 = vmul.f32 %v77, %v77
  %v86 = vsel %vm46, %v78, 0.0
  %v87 = vsel %vm46, %v79, 0.0
  %v88 = vadd.f32 %v86, %v87
  %v89 = vsel %vm46, %v80, 0.0
  %v90 = vadd.f32 %v88, %v89
  %v91 = vsel %vm46, %v81, 0.0
  %v92 = vadd.f32 %v90, %v91
  %v93 = vsel %vm46, %v82, 0.0
  %v94 = vadd.f32 %v92, %v93
  %v95 = vsel %vm46, %v83, 0.0
  %v96 = vadd.f32 %v94, %v95
  %v97 = vsel %vm46, %v84, 0.0
  %v98 = vadd.f32 %v96, %v97
  %v99 = vsel %vm46, %v85, 0.0
  %v100 = vadd.f32 %v98, %v99
  %v101 = vmul.f32 %v100, %v68
  %v102 = vrsqrt.pop %v101
  %v103 = vmul.f32 %v102, %v101
  %v104 = vmul.f32 %v103, %v102
  %v105 = vmul.f32 0.5, %v104
  %v106 = vsub.f32 1.5, %v105
  %v107 = vmul.f32 %v102, %v106
  %v108 = vmul.f32 %v101, %v107
  %vm109 = vcmp.eq.f32.partialorder %v101, inf
  %v110 = vsel %vm109, %v101, %v108
  %vm111 = vcmp.eq.f32.partialorder %v101, 0.0
  %v112 = vand.u32 %v101, 2147483648
  %v113 = vsel %vm111, %v112, %v110
  %v114 = vadd.f32 %v113, 1e-08
  %v115 = vrcp.pop %v114
  %v116 = vmul.f32 %v114, %v115
  %v117 = vsub.f32 1.0, %v116
  %v118 = vmul.f32 %v115, %v117
  %v119 = vadd.f32 %v115, %v118
  %vm120 = vweird.f32 %v114
  %vm121 = vweird.f32 %v115
  %vm122 = vmor %vm120, %vm121
  %v123 = vsel %vm122, %v115, %v119
  %v124 = vand.u32 2147483647, %v114
  %vm125 = vcmp.eq.f32.partialorder %v124, 8.507059e+37
  %v126 = vand.u32 %v114, 2147483648
  %v127 = vor.u32 1.1754944e-38, %v126
  %v128 = vsel %vm125, %v127, %v123
  %v129 = vmul.f32 %v70, %v128
  %v130 = vmul.f32 %v71, %v128
  %v131 = vmul.f32 %v72, %v128
  %v132 = vmul.f32 %v73, %v128
  %v133 = vmul.f32 %v74, %v128
  %v134 = vmul.f32 %v75, %v128
  %v135 = vmul.f32 %v76, %v128
  %v136 = vmul.f32 %v77, %v128
  %v137 = vpack.c.bf16 %v130, %v129
  %v138 = vpack.c.bf16 %v132, %v131
  %v139 = vpack.c.bf16 %v134, %v133
  %v140 = vpack.c.bf16 %v136, %v135
  %v141 = vpack.c.bf16 %v22, %v22
  %v142 = vperm.slane %v34, 0
  %v144 = vsel %vm46, %v137, 0
  %v147 = vsel %vm46, %v138, 0
  %v150 = vsel %vm46, %v139, 0
  %v153 = vsel %vm46, %v140, 0
  %vm155 = vcmask 1041408
  %v157 = vsel %vm155, %v141, 0
  %159 = vmatpush.bf16.msra.mxu0 0
  %160 = vmatpush.bf16.msra.mxu0 0
  %161 = vmatpush.bf16.msra.mxu0 0
  %162 = vmatpush.bf16.msra.mxu0 0
  %163 = vmatpush.bf16.msra.mxu0 0
  %164 = vmatpush.bf16.msra.mxu0 0
  %165 = vmatpush.bf16.msra.mxu0 0
  %166 = vmatpush.bf16.msra.mxu0 %v157
  %167 = vmatmul.bf16.gmra.mxu0 %v144
  %v168 = vpop.f32.mrf.mxu0
  %v169 = vadd.f32 %v142, %v168
  %v170 = vpop.f32.mrf.mxu0
  %v171 = vadd.f32 %v142, %v170
  %172 = vmatmul.bf16.gmra.mxu0 %v147
  %v173 = vpop.f32.mrf.mxu0
  %v174 = vadd.f32 %v142, %v173
  %v175 = vpop.f32.mrf.mxu0
  %v176 = vadd.f32 %v142, %v175
  %177 = vmatmul.bf16.gmra.mxu0 %v150
  %v178 = vpop.f32.mrf.mxu0
  %v179 = vadd.f32 %v142, %v178
  %v180 = vpop.f32.mrf.mxu0
  %v181 = vadd.f32 %v142, %v180
  %182 = vmatmul.bf16.gmra.mxu0 %v153
  %v183 = vpop.f32.mrf.mxu0
  %v184 = vadd.f32 %v142, %v183
  %v185 = vpop.f32.mrf.mxu0
  %v186 = vadd.f32 %v142, %v185
  %187 = vdwg.mxu0
  %vm188 = vcmask 785408
  %189 = vst.msk [vmem:[#allocation2] sm:$0xff] %vm188, %v169
  %190 = vst.msk [vmem:[#allocation2 + $0x8] sm:$0xff] %vm188, %v171
  %191 = vst.msk [vmem:[#allocation2 + $0x10] sm:$0xff] %vm188, %v174
  %192 = vst.msk [vmem:[#allocation2 + $0x18] sm:$0xff] %vm188, %v176
  %193 = vst.msk [vmem:[#allocation2 + $0x20] sm:$0xff] %vm188, %v179
  %194 = vst.msk [vmem:[#allocation2 + $0x28] sm:$0xff] %vm188, %v181
  %195 = vst.msk [vmem:[#allocation2 + $0x30] sm:$0xff] %vm188, %v184
  %196 = vst.msk [vmem:[#allocation2 + $0x38] sm:$0xff] %vm188, %v186
  %v197 = vld [vmem:[%s2] sm:$0xff]
  %v198 = vperm.slane %v33, 0
  %vm199 = vcmask 261120
  %v201 = vsel %vm199, %v197, 0
  %203 = vmatpush.msra.mxu0 0.0
  %204 = vmatpush.msra.mxu0 0.0
  %205 = vmatpush.msra.mxu0 0.0
  %206 = vmatpush.msra.mxu0 0.0
  %207 = vmatpush.msra.mxu0 0.0
  %208 = vmatpush.msra.mxu0 0.0
  %209 = vmatpush.msra.mxu0 0.0
  %210 = vmatpush.msra.mxu0 0.0
  %211 = vmatpush.msra.mxu0 0.0
  %212 = vmatpush.msra.mxu0 0.0
  %213 = vmatpush.msra.mxu0 0.0
  %214 = vmatpush.msra.mxu0 0.0
  %215 = vmatpush.msra.mxu0 %v21
  %216 = vmatpush.msra.mxu0 %v20
  %217 = vmatpush.msra.mxu0 %v19
  %218 = vmatpush.msra.mxu0 %v18
  %219 = vmatmul.f32.gmra.mxu0 %v201
  %v220 = vpop.f32.mrf.mxu0
  %v221 = vadd.f32 %v198, %v220
  %222 = vdwg.mxu0
  %v223 = vpack.c.bf16 %v24, %v23
  %v224 = vpack.c.bf16 %v26, %v25
  %v225 = vld [vmem:[#allocation2] sm:$0xff]
  %v226 = vpack.c.bf16 %v221, %v221
  %v228 = vsel %vm199, %v226, 0
  %230 = vmatpush.bf16.msra.mxu0 0
  %231 = vmatpush.bf16.msra.mxu0 0
  %232 = vmatpush.bf16.msra.mxu0 0
  %233 = vmatpush.bf16.msra.mxu0 0
  %234 = vmatpush.bf16.msra.mxu0 0
  %235 = vmatpush.bf16.msra.mxu0 0
  %236 = vmatpush.bf16.msra.mxu0 %v224
  %237 = vmatpush.bf16.msra.mxu0 %v223
  %238 = vmatmul.bf16.gmra.mxu0 %v228
  %v239 = vpop.f32.mrf.mxu0
  %v240 = vadd.f32 0.0, %v239
  %v241 = vpop.f32.mrf.mxu0
  %242 = vdwg.mxu0
  %v243 = vadd.f32 %v225, %v240
  %v244 = vxor.u32 %v243, 2147483648
  %v245 = vmul.f32 %v244, 1.442695
  %v246 = vpow.pop %v245
  %v247 = vadd.f32 %v246, 1.0
  %v248 = vrcp.pop %v247
  %v249 = vmul.f32 %v247, %v248
  %v250 = vsub.f32 1.0, %v249
  %v251 = vmul.f32 %v248, %v250
  %v252 = vadd.f32 %v248, %v251
  %vm253 = vweird.f32 %v247
  %vm254 = vweird.f32 %v248
  %vm255 = vmor %vm253, %vm254
  %v256 = vsel %vm255, %v248, %v252
  %v257 = vand.u32 2147483647, %v247
  %vm258 = vcmp.eq.f32.partialorder %v257, 8.507059e+37
  %v259 = vand.u32 %v247, 2147483648
  %v260 = vor.u32 1.1754944e-38, %v259
  %v261 = vsel %vm258, %v260, %v256
  %v262 = vmul.f32 1.0, %v261
  %v263 = vperm.slane %v35, 0
  %265 = vrot.lane.b32.xlu0 %v263, 64
  %v266 = vpop.permute.xlu0 %265
  %v268 = vadd.f32 %v240, %v266
  %270 = vrot.lane.b32.xlu0 %v268, 64
  %v271 = vpop.permute.xlu0 %270
  %v273 = vmul.f32 %v262, %v271
  %275 = vrot.lane.b32.xlu0 %v273, 64
  %v276 = vpop.permute.xlu0 %275
  %v278 = vadd.f32 %v225, %v276
  %v279 = vtanh.pop %v278
  %281 = vrot.lane.b32.xlu0 %v279, 64
  %v282 = vpop.permute.xlu0 %281
  %v284 = vsub.f32 %v221, %v282
  %286 = vrot.lane.b32.xlu0 %v284, 32
  %v287 = vpop.permute.xlu0 %286
  %v289 = vmul.f32 %v262, %v287
  %291 = vrot.lane.b32.xlu0 %v289, 32
  %v292 = vpop.permute.xlu0 %291
  %v294 = vadd.f32 %v279, %v292
  %s295 = scalar_lea.vmem [#allocation2], 8
  %v296 = vld [vmem:[%s295] sm:$0xff]
  %v297 = vpack.c.bf16 %v294, %v294
  %299 = vrot.lane.b32.xlu0 %v297, 64
  %v300 = vpop.permute.xlu0 %299
  %v302 = vsel %vm199, %v300, 0
  %304 = vmatpush.bf16.msra.mxu0 0
  %305 = vmatpush.bf16.msra.mxu0 0
  %306 = vmatpush.bf16.msra.mxu0 0
  %307 = vmatpush.bf16.msra.mxu0 0
  %308 = vmatpush.bf16.msra.mxu0 0
  %309 = vmatpush.bf16.msra.mxu0 0
  %310 = vmatpush.bf16.msra.mxu0 %v224
  %311 = vmatpush.bf16.msra.mxu0 %v223
  %312 = vmatmul.bf16.gmra.mxu0 %v302
  %v313 = vpop.f32.mrf.mxu0
  %v314 = vadd.f32 0.0, %v313
  %v315 = vpop.f32.mrf.mxu0
  %316 = vdwg.mxu0
  %v317 = vadd.f32 %v296, %v314
  %v318 = vxor.u32 %v317, 2147483648
  %v319 = vmul.f32 %v318, 1.442695
  %v320 = vpow.pop %v319
  %v321 = vadd.f32 %v320, 1.0
  %v322 = vrcp.pop %v321
  %v323 = vmul.f32 %v321, %v322
  %v324 = vsub.f32 1.0, %v323
  %v325 = vmul.f32 %v322, %v324
  %v326 = vadd.f32 %v322, %v325
  %vm327 = vweird.f32 %v321
  %vm328 = vweird.f32 %v322
  %vm329 = vmor %vm327, %vm328
  %v330 = vsel %vm329, %v322, %v326
  %v331 = vand.u32 2147483647, %v321
  %vm332 = vcmp.eq.f32.partialorder %v331, 8.507059e+37
  %v333 = vand.u32 %v321, 2147483648
  %v334 = vor.u32 1.1754944e-38, %v333
  %v335 = vsel %vm332, %v334, %v330
  %v336 = vmul.f32 1.0, %v335
  %v337 = vadd.f32 %v314, %v266
  %339 = vrot.lane.b32.xlu0 %v337, 64
  %v340 = vpop.permute.xlu0 %339
  %v342 = vmul.f32 %v336, %v340
  %344 = vrot.lane.b32.xlu0 %v342, 64
  %v345 = vpop.permute.xlu0 %344
  %v347 = vadd.f32 %v296, %v345
  %v348 = vtanh.pop %v347
  %v349 = vsub.f32 %v294, %v348
  %351 = vrot.lane.b32.xlu0 %v349, 96
  %v352 = vpop.permute.xlu0 %351
  %v354 = vmul.f32 %v336, %v352
  %356 = vrot.lane.b32.xlu0 %v354, 32
  %v357 = vpop.permute.xlu0 %356
  %v359 = vadd.f32 %v348, %v357
  %s360 = scalar_lea.vmem [#allocation2], 16
  %v361 = vld [vmem:[%s360] sm:$0xff]
  %v362 = vpack.c.bf16 %v359, %v359
  %364 = vrot.lane.b32.xlu0 %v362, 64
  %v365 = vpop.permute.xlu0 %364
  %v367 = vsel %vm199, %v365, 0
  %369 = vmatpush.bf16.msra.mxu0 0
  %370 = vmatpush.bf16.msra.mxu0 0
  %371 = vmatpush.bf16.msra.mxu0 0
  %372 = vmatpush.bf16.msra.mxu0 0
  %373 = vmatpush.bf16.msra.mxu0 0
  %374 = vmatpush.bf16.msra.mxu0 0
  %375 = vmatpush.bf16.msra.mxu0 %v224
  %376 = vmatpush.bf16.msra.mxu0 %v223
  %377 = vmatmul.bf16.gmra.mxu0 %v367
  %v378 = vpop.f32.mrf.mxu0
  %v379 = vadd.f32 0.0, %v378
  %v380 = vpop.f32.mrf.mxu0
  %381 = vdwg.mxu0
  %v382 = vadd.f32 %v361, %v379
  %v383 = vxor.u32 %v382, 2147483648
  %v384 = vmul.f32 %v383, 1.442695
  %v385 = vpow.pop %v384
  %v386 = vadd.f32 %v385, 1.0
  %v387 = vrcp.pop %v386
  %v388 = vmul.f32 %v386, %v387
  %v389 = vsub.f32 1.0, %v388
  %v390 = vmul.f32 %v387, %v389
  %v391 = vadd.f32 %v387, %v390
  %vm392 = vweird.f32 %v386
  %vm393 = vweird.f32 %v387
  %vm394 = vmor %vm392, %vm393
  %v395 = vsel %vm394, %v387, %v391
  %v396 = vand.u32 2147483647, %v386
  %vm397 = vcmp.eq.f32.partialorder %v396, 8.507059e+37
  %v398 = vand.u32 %v386, 2147483648
  %v399 = vor.u32 1.1754944e-38, %v398
  %v400 = vsel %vm397, %v399, %v395
  %v401 = vmul.f32 1.0, %v400
  %v402 = vadd.f32 %v379, %v266
  %404 = vrot.lane.b32.xlu0 %v402, 64
  %v405 = vpop.permute.xlu0 %404
  %v407 = vmul.f32 %v401, %v405
  %409 = vrot.lane.b32.xlu0 %v407, 64
  %v410 = vpop.permute.xlu0 %409
  %v412 = vadd.f32 %v361, %v410
  %v413 = vtanh.pop %v412
  %v414 = vsub.f32 %v359, %v413
  %416 = vrot.lane.b32.xlu0 %v414, 96
  %v417 = vpop.permute.xlu0 %416
  %v419 = vmul.f32 %v401, %v417
  %421 = vrot.lane.b32.xlu0 %v419, 32
  %v422 = vpop.permute.xlu0 %421
  %v424 = vadd.f32 %v413, %v422
  %s425 = scalar_lea.vmem [#allocation2], 24
  %v426 = vld [vmem:[%s425] sm:$0xff]
  %v427 = vpack.c.bf16 %v424, %v424
  %429 = vrot.lane.b32.xlu0 %v427, 64
  %v430 = vpop.permute.xlu0 %429
  %v432 = vsel %vm199, %v430, 0
  %434 = vmatpush.bf16.msra.mxu0 0
  %435 = vmatpush.bf16.msra.mxu0 0
  %436 = vmatpush.bf16.msra.mxu0 0
  %437 = vmatpush.bf16.msra.mxu0 0
  %438 = vmatpush.bf16.msra.mxu0 0
  %439 = vmatpush.bf16.msra.mxu0 0
  %440 = vmatpush.bf16.msra.mxu0 %v224
  %441 = vmatpush.bf16.msra.mxu0 %v223
  %442 = vmatmul.bf16.gmra.mxu0 %v432
  %v443 = vpop.f32.mrf.mxu0
  %v444 = vadd.f32 0.0, %v443
  %v445 = vpop.f32.mrf.mxu0
  %446 = vdwg.mxu0
  %v447 = vadd.f32 %v426, %v444
  %v448 = vxor.u32 %v447, 2147483648
  %v449 = vmul.f32 %v448, 1.442695
  %v450 = vpow.pop %v449
  %v451 = vadd.f32 %v450, 1.0
  %v452 = vrcp.pop %v451
  %v453 = vmul.f32 %v451, %v452
  %v454 = vsub.f32 1.0, %v453
  %v455 = vmul.f32 %v452, %v454
  %v456 = vadd.f32 %v452, %v455
  %vm457 = vweird.f32 %v451
  %vm458 = vweird.f32 %v452
  %vm459 = vmor %vm457, %vm458
  %v460 = vsel %vm459, %v452, %v456
  %v461 = vand.u32 2147483647, %v451
  %vm462 = vcmp.eq.f32.partialorder %v461, 8.507059e+37
  %v463 = vand.u32 %v451, 2147483648
  %v464 = vor.u32 1.1754944e-38, %v463
  %v465 = vsel %vm462, %v464, %v460
  %v466 = vmul.f32 1.0, %v465
  %v467 = vadd.f32 %v444, %v266
  %469 = vrot.lane.b32.xlu0 %v467, 64
  %v470 = vpop.permute.xlu0 %469
  %v472 = vmul.f32 %v466, %v470
  %474 = vrot.lane.b32.xlu0 %v472, 64
  %v475 = vpop.permute.xlu0 %474
  %v477 = vadd.f32 %v426, %v475
  %v478 = vtanh.pop %v477
  %v479 = vsub.f32 %v424, %v478
  %481 = vrot.lane.b32.xlu0 %v479, 96
  %v482 = vpop.permute.xlu0 %481
  %v484 = vmul.f32 %v466, %v482
  %486 = vrot.lane.b32.xlu0 %v484, 32
  %v487 = vpop.permute.xlu0 %486
  %v489 = vadd.f32 %v478, %v487
  %s490 = scalar_lea.vmem [#allocation2], 32
  %v491 = vld [vmem:[%s490] sm:$0xff]
  %v492 = vpack.c.bf16 %v489, %v489
  %494 = vrot.lane.b32.xlu0 %v492, 64
  %v495 = vpop.permute.xlu0 %494
  %v497 = vsel %vm199, %v495, 0
  %499 = vmatpush.bf16.msra.mxu0 0
  %500 = vmatpush.bf16.msra.mxu0 0
  %501 = vmatpush.bf16.msra.mxu0 0
  %502 = vmatpush.bf16.msra.mxu0 0
  %503 = vmatpush.bf16.msra.mxu0 0
  %504 = vmatpush.bf16.msra.mxu0 0
  %505 = vmatpush.bf16.msra.mxu0 %v224
  %506 = vmatpush.bf16.msra.mxu0 %v223
  %507 = vmatmul.bf16.gmra.mxu0 %v497
  %v508 = vpop.f32.mrf.mxu0
  %v509 = vadd.f32 0.0, %v508
  %v510 = vpop.f32.mrf.mxu0
  %511 = vdwg.mxu0
  %v512 = vadd.f32 %v491, %v509
  %v513 = vxor.u32 %v512, 2147483648
  %v514 = vmul.f32 %v513, 1.442695
  %v515 = vpow.pop %v514
  %v516 = vadd.f32 %v515, 1.0
  %v517 = vrcp.pop %v516
  %v518 = vmul.f32 %v516, %v517
  %v519 = vsub.f32 1.0, %v518
  %v520 = vmul.f32 %v517, %v519
  %v521 = vadd.f32 %v517, %v520
  %vm522 = vweird.f32 %v516
  %vm523 = vweird.f32 %v517
  %vm524 = vmor %vm522, %vm523
  %v525 = vsel %vm524, %v517, %v521
  %v526 = vand.u32 2147483647, %v516
  %vm527 = vcmp.eq.f32.partialorder %v526, 8.507059e+37
  %v528 = vand.u32 %v516, 2147483648
  %v529 = vor.u32 1.1754944e-38, %v528
  %v530 = vsel %vm527, %v529, %v525
  %v531 = vmul.f32 1.0, %v530
  %v532 = vadd.f32 %v509, %v266
  %534 = vrot.lane.b32.xlu0 %v532, 64
  %v535 = vpop.permute.xlu0 %534
  %v537 = vmul.f32 %v531, %v535
  %539 = vrot.lane.b32.xlu0 %v537, 64
  %v540 = vpop.permute.xlu0 %539
  %v542 = vadd.f32 %v491, %v540
  %v543 = vtanh.pop %v542
  %v544 = vsub.f32 %v489, %v543
  %546 = vrot.lane.b32.xlu0 %v544, 96
  %v547 = vpop.permute.xlu0 %546
  %v549 = vmul.f32 %v531, %v547
  %551 = vrot.lane.b32.xlu0 %v549, 32
  %v552 = vpop.permute.xlu0 %551
  %v554 = vadd.f32 %v543, %v552
  %s555 = scalar_lea.vmem [#allocation2], 40
  %v556 = vld [vmem:[%s555] sm:$0xff]
  %v557 = vpack.c.bf16 %v554, %v554
  %559 = vrot.lane.b32.xlu0 %v557, 64
  %v560 = vpop.permute.xlu0 %559
  %v562 = vsel %vm199, %v560, 0
  %564 = vmatpush.bf16.msra.mxu0 0
  %565 = vmatpush.bf16.msra.mxu0 0
  %566 = vmatpush.bf16.msra.mxu0 0
  %567 = vmatpush.bf16.msra.mxu0 0
  %568 = vmatpush.bf16.msra.mxu0 0
  %569 = vmatpush.bf16.msra.mxu0 0
  %570 = vmatpush.bf16.msra.mxu0 %v224
  %571 = vmatpush.bf16.msra.mxu0 %v223
  %572 = vmatmul.bf16.gmra.mxu0 %v562
  %v573 = vpop.f32.mrf.mxu0
  %v574 = vadd.f32 0.0, %v573
  %v575 = vpop.f32.mrf.mxu0
  %576 = vdwg.mxu0
  %v577 = vadd.f32 %v556, %v574
  %v578 = vxor.u32 %v577, 2147483648
  %v579 = vmul.f32 %v578, 1.442695
  %v580 = vpow.pop %v579
  %v581 = vadd.f32 %v580, 1.0
  %v582 = vrcp.pop %v581
  %v583 = vmul.f32 %v581, %v582
  %v584 = vsub.f32 1.0, %v583
  %v585 = vmul.f32 %v582, %v584
  %v586 = vadd.f32 %v582, %v585
  %vm587 = vweird.f32 %v581
  %vm588 = vweird.f32 %v582
  %vm589 = vmor %vm587, %vm588
  %v590 = vsel %vm589, %v582, %v586
  %v591 = vand.u32 2147483647, %v581
  %vm592 = vcmp.eq.f32.partialorder %v591, 8.507059e+37
  %v593 = vand.u32 %v581, 2147483648
  %v594 = vor.u32 1.1754944e-38, %v593
  %v595 = vsel %vm592, %v594, %v590
  %v596 = vmul.f32 1.0, %v595
  %v597 = vadd.f32 %v574, %v266
  %599 = vrot.lane.b32.xlu0 %v597, 64
  %v600 = vpop.permute.xlu0 %599
  %v602 = vmul.f32 %v596, %v600
  %604 = vrot.lane.b32.xlu0 %v602, 64
  %v605 = vpop.permute.xlu0 %604
  %v607 = vadd.f32 %v556, %v605
  %v608 = vtanh.pop %v607
  %v609 = vsub.f32 %v554, %v608
  %611 = vrot.lane.b32.xlu0 %v609, 96
  %v612 = vpop.permute.xlu0 %611
  %v614 = vmul.f32 %v596, %v612
  %616 = vrot.lane.b32.xlu0 %v614, 32
  %v617 = vpop.permute.xlu0 %616
  %v619 = vadd.f32 %v608, %v617
  %s620 = scalar_lea.vmem [#allocation2], 48
  %v621 = vld [vmem:[%s620] sm:$0xff]
  %v622 = vpack.c.bf16 %v619, %v619
  %624 = vrot.lane.b32.xlu0 %v622, 64
  %v625 = vpop.permute.xlu0 %624
  %v627 = vsel %vm199, %v625, 0
  %629 = vmatpush.bf16.msra.mxu0 0
  %630 = vmatpush.bf16.msra.mxu0 0
  %631 = vmatpush.bf16.msra.mxu0 0
  %632 = vmatpush.bf16.msra.mxu0 0
  %633 = vmatpush.bf16.msra.mxu0 0
  %634 = vmatpush.bf16.msra.mxu0 0
  %635 = vmatpush.bf16.msra.mxu0 %v224
  %636 = vmatpush.bf16.msra.mxu0 %v223
  %637 = vmatmul.bf16.gmra.mxu0 %v627
  %v638 = vpop.f32.mrf.mxu0
  %v639 = vadd.f32 0.0, %v638
  %v640 = vpop.f32.mrf.mxu0
  %641 = vdwg.mxu0
  %v642 = vadd.f32 %v621, %v639
  %v643 = vxor.u32 %v642, 2147483648
  %v644 = vmul.f32 %v643, 1.442695
  %v645 = vpow.pop %v644
  %v646 = vadd.f32 %v645, 1.0
  %v647 = vrcp.pop %v646
  %v648 = vmul.f32 %v646, %v647
  %v649 = vsub.f32 1.0, %v648
  %v650 = vmul.f32 %v647, %v649
  %v651 = vadd.f32 %v647, %v650
  %vm652 = vweird.f32 %v646
  %vm653 = vweird.f32 %v647
  %vm654 = vmor %vm652, %vm653
  %v655 = vsel %vm654, %v647, %v651
  %v656 = vand.u32 2147483647, %v646
  %vm657 = vcmp.eq.f32.partialorder %v656, 8.507059e+37
  %v658 = vand.u32 %v646, 2147483648
  %v659 = vor.u32 1.1754944e-38, %v658
  %v660 = vsel %vm657, %v659, %v655
  %v661 = vmul.f32 1.0, %v660
  %v662 = vadd.f32 %v639, %v266
  %664 = vrot.lane.b32.xlu0 %v662, 64
  %v665 = vpop.permute.xlu0 %664
  %v667 = vmul.f32 %v661, %v665
  %669 = vrot.lane.b32.xlu0 %v667, 64
  %v670 = vpop.permute.xlu0 %669
  %v672 = vadd.f32 %v621, %v670
  %v673 = vtanh.pop %v672
  %v674 = vsub.f32 %v619, %v673
  %676 = vrot.lane.b32.xlu0 %v674, 96
  %v677 = vpop.permute.xlu0 %676
  %v679 = vmul.f32 %v661, %v677
  %681 = vrot.lane.b32.xlu0 %v679, 32
  %v682 = vpop.permute.xlu0 %681
  %v684 = vadd.f32 %v673, %v682
  %s685 = scalar_lea.vmem [#allocation2], 56
  %v686 = vld [vmem:[%s685] sm:$0xff]
  %v687 = vpack.c.bf16 %v684, %v684
  %689 = vrot.lane.b32.xlu0 %v687, 64
  %v690 = vpop.permute.xlu0 %689
  %v692 = vsel %vm199, %v690, 0
  %694 = vmatpush.bf16.msra.mxu0 0
  %695 = vmatpush.bf16.msra.mxu0 0
  %696 = vmatpush.bf16.msra.mxu0 0
  %697 = vmatpush.bf16.msra.mxu0 0
  %698 = vmatpush.bf16.msra.mxu0 0
  %699 = vmatpush.bf16.msra.mxu0 0
  %700 = vmatpush.bf16.msra.mxu0 %v224
  %701 = vmatpush.bf16.msra.mxu0 %v223
  %702 = vmatmul.bf16.gmra.mxu0 %v692
  %v703 = vpop.f32.mrf.mxu0
  %v704 = vadd.f32 0.0, %v703
  %v705 = vpop.f32.mrf.mxu0
  %706 = vdwg.mxu0
  %v707 = vadd.f32 %v686, %v704
  %v708 = vxor.u32 %v707, 2147483648
  %v709 = vmul.f32 %v708, 1.442695
  %v710 = vpow.pop %v709
  %v711 = vadd.f32 %v710, 1.0
  %v712 = vrcp.pop %v711
  %v713 = vmul.f32 %v711, %v712
  %v714 = vsub.f32 1.0, %v713
  %v715 = vmul.f32 %v712, %v714
  %v716 = vadd.f32 %v712, %v715
  %vm717 = vweird.f32 %v711
  %vm718 = vweird.f32 %v712
  %vm719 = vmor %vm717, %vm718
  %v720 = vsel %vm719, %v712, %v716
  %v721 = vand.u32 2147483647, %v711
  %vm722 = vcmp.eq.f32.partialorder %v721, 8.507059e+37
  %v723 = vand.u32 %v711, 2147483648
  %v724 = vor.u32 1.1754944e-38, %v723
  %v725 = vsel %vm722, %v724, %v720
  %v726 = vmul.f32 1.0, %v725
  %v727 = vadd.f32 %v704, %v266
  %729 = vrot.lane.b32.xlu0 %v727, 64
  %v730 = vpop.permute.xlu0 %729
  %v732 = vmul.f32 %v726, %v730
  %734 = vrot.lane.b32.xlu0 %v732, 64
  %v735 = vpop.permute.xlu0 %734
  %v737 = vadd.f32 %v686, %v735
  %v738 = vtanh.pop %v737
  %v739 = vsub.f32 %v684, %v738
  %741 = vrot.lane.b32.xlu0 %v739, 96
  %v742 = vpop.permute.xlu0 %741
  %v744 = vmul.f32 %v726, %v742
  %746 = vrot.lane.b32.xlu0 %v744, 32
  %v747 = vpop.permute.xlu0 %746
  %v749 = vadd.f32 %v738, %v747
  %v750 = vld [vmem:[%s1] sm:$0xff]
  %752 = vset.pattern.permute.xlu0 0
  %753 = vperm.xlu0 %752, %v750
  %v754 = vpop.permute.xlu0 %753
  %v756 = vperm.slane %v27, 0
  %v757 = vmul.f32 %v754, %v756
  %v758 = vperm.slane %v36, 0
  %v759 = vadd.f32 %v757, %v758
  %v760 = vlaneseq
  %v761 = vand.u32 %v760, 127
  %vm762 = vcmp.eq.s32.totalorder %v761, 0
  %v763 = vand.u32 2147483647, %v759
  %vm764 = vcmp.le.f32.partialorder %v763, 0.7853982
  %vm765 = vcmp.lt.s32.totalorder %v759, 0
  %v766 = vand.u32 %v759, 2139095040
  %v767 = vshrl.u32 %v766, 23
  %v768 = vsub.s32 %v767, 127
  %v769 = vand.u32 2147483647, %v759
  %v770 = vand.u32 %v769, 8388607
  %v771 = vor.u32 %v770, 8388608
  %v772 = vsub.s32 0, %v771
  %v773 = vadd.s32 %v768, 1
  %vm774 = vcmp.gt.s32.totalorder %v773, 0
  %v775 = vsel %vm774, %v773, 0
  %v776 = vshrl.u32 %v775, 5
  %v777 = vand.u32 %v775, 31
  %v778 = vsub.s32 32, %v777
  %v779 = vshrl.u32 683565275, %v778
  %v780 = vshll.u32 683565275, %v777
  %v781 = vshrl.u32 2475754826, %v778
  %v782 = vor.u32 %v780, %v781
  %v783 = vshll.u32 2475754826, %v777
  %v784 = vshrl.u32 2131351028, %v778
  %v785 = vor.u32 %v783, %v784
  %v786 = vshll.u32 2131351028, %v777
  %v787 = vshrl.u32 2102212464, %v778
  %v788 = vor.u32 %v786, %v787
  %v789 = vshll.u32 2102212464, %v777
  %v790 = vshrl.u32 920167782, %v778
  %v791 = vor.u32 %v789, %v790
  %v792 = vshll.u32 920167782, %v777
  %v793 = vshrl.u32 1326507024, %v778
  %v794 = vor.u32 %v792, %v793
  %vm795 = vcmp.lt.s32.totalorder %v776, 1
  %vm796 = vcmp.lt.s32.totalorder %v776, 2
  %vm797 = vcmp.lt.s32.totalorder %v776, 3
  %vm798 = vcmp.lt.s32.totalorder %v776, 4
  %v799 = vsel %vm795, %v779, %v782
  %v800 = vsel %vm798, %v788, 2102212464
  %v801 = vsel %vm797, %v785, %v800
  %v802 = vsel %vm796, %v799, %v801
  %v803 = vsel %vm795, %v782, %v785
  %v804 = vsel %vm798, %v791, 920167782
  %v805 = vsel %vm797, %v788, %v804
  %v806 = vsel %vm796, %v803, %v805
  %v807 = vsel %vm795, %v785, %v788
  %v808 = vsel %vm798, %v794, 1326507024
  %v809 = vsel %vm797, %v791, %v808
  %v810 = vsel %vm796, %v807, %v809
  %v811 = vshll.u32 %v771, 8
  %v812 = vand.u32 %v811, 65535
  %v813 = vshrl.u32 %v811, 16
  %v814 = vand.u32 %v810, 65535
  %v815 = vshrl.u32 %v810, 16
  %v816 = vmul.u32 %v812, %v814
  %v817 = vmul.u32 %v812, %v815
  %v818 = vmul.u32 %v813, %v814
  %v819 = vmul.u32 %v813, %v815
  %v820 = vshll.u32 %v817, 16
  %v821 = vshrl.u32 %v817, 16
  %v822 = vshll.u32 %v818, 16
  %v823 = vshrl.u32 %v818, 16
  %vm824 = vc.u32 %v816, %v820
  %v825 = vsel %vm824, 1, 0
  %v826 = vadd.s32 %v816, %v820
  %v827 = vadd.s32 %v819, %v825
  %vm828 = vc.u32 %v826, %v822
  %v829 = vsel %vm828, 1, 0
  %v830 = vadd.s32 %v826, %v822
  %v831 = vadd.s32 %v827, %v829
  %v832 = vadd.s32 %v831, %v821
  %v833 = vadd.s32 %v832, %v823
  %v834 = vand.u32 %v811, 65535
  %v835 = vshrl.u32 %v811, 16
  %v836 = vand.u32 %v806, 65535
  %v837 = vshrl.u32 %v806, 16
  %v838 = vmul.u32 %v834, %v836
  %v839 = vmul.u32 %v834, %v837
  %v840 = vmul.u32 %v835, %v836
  %v841 = vmul.u32 %v835, %v837
  %v842 = vshll.u32 %v839, 16
  %v843 = vshrl.u32 %v839, 16
  %v844 = vshll.u32 %v840, 16
  %v845 = vshrl.u32 %v840, 16
  %vm846 = vc.u32 %v838, %v842
  %v847 = vsel %vm846, 1, 0
  %v848 = vadd.s32 %v838, %v842
  %v849 = vadd.s32 %v841, %v847
  %vm850 = vc.u32 %v848, %v844
  %v851 = vsel %vm850, 1, 0
  %v852 = vadd.s32 %v848, %v844
  %v853 = vadd.s32 %v849, %v851
  %v854 = vadd.s32 %v853, %v843
  %v855 = vadd.s32 %v854, %v845
  %v856 = vmul.u32 %v811, %v802
  %v857 = vadd.s32 %v833, %v852
  %vm858 = vc.u32 %v833, %v852
  %v859 = vadd.s32 %v855, 1
  %v860 = vsel %vm858, %v859, %v855
  %v861 = vadd.s32 %v856, %v860
  %v862 = vadd.s32 %v861, 536870912
  %v863 = vshrl.u32 %v862, 30
  %v864 = vshll.u32 %v863, 30
  %v865 = vsub.s32 %v861, %v864
  %vm866 = vcmp.lt.s32.totalorder %v865, 0
  %v867 = vsub.s32 0, %v865
  %v868 = vsel %vm866, %v867, %v865
  %v869 = vclz %v868
  %v870 = vsub.s32 %v869, 2
  %vm871 = vcmp.gt.s32.totalorder 0, %v870
  %v872 = vsel %vm871, 0, %v870
  %v873 = vsub.s32 32, %v872
  %v874 = vshll.u32 %v865, %v872
  %v875 = vshrl.u32 %v857, %v873
  %v876 = vor.u32 %v874, %v875
  %v877 = vsub.s32 4294967266, %v872
  %v878 = vadd.s32 %v877, 127
  %v879 = vshll.u32 %v878, 23
  %v880 = vor.u32 4788187, %v879
  %v881 = vand.u32 2147483647, %v880
  %v883 = vcvt.s32.f32 %v876
  %v884 = vmul.f32 %v883, %v881
  %v885 = vxor.u32 %v884, 2147483648
  %v886 = vsel %vm765, %v885, %v884
  %v887 = vsub.s32 4, %v863
  %v888 = vsel %vm765, %v887, %v863
  %v889 = vsel %vm764, %v759, %v886
  %v890 = vsel %vm764, 0, %v888
  %v891 = vmul.f32 %v889, %v889
  %v892 = vmul.f32 %v891, -0.001358992
  %v893 = vadd.f32 %v892, 0.041655596
  %v894 = vmul.f32 %v891, %v893
  %v895 = vadd.f32 %v894, -0.4999988
  %v896 = vmul.f32 %v891, %v895
  %v897 = vadd.f32 1.0, %v896
  %v898 = vmul.f32 %v889, %v889
  %v899 = vmul.f32 %v898, -0.00019511016
  %v900 = vadd.f32 %v899, 0.008332121
  %v901 = vmul.f32 %v898, %v900
  %v902 = vadd.f32 %v901, -0.16666654
  %v903 = vmul.f32 %v898, %v902
  %v904 = vadd.f32 %v903, 1.0
  %v905 = vmul.f32 %v904, %v889
  %vm906 = vweird.f32 %v759
  %v907 = vadd.s32 %v890, 3
  %v908 = vand.u32 %v907, 3
  %vm909 = vcmp.lt.s32.totalorder %v908, 2
  %vm910 = vcmp.eq.s32.totalorder %v908, 0
  %v911 = vxor.u32 %v905, 2147483648
  %v912 = vsel %vm910, %v897, %v911
  %vm913 = vcmp.eq.s32.totalorder %v908, 2
  %v914 = vxor.u32 %v897, 2147483648
  %v915 = vsel %vm913, %v914, %v905
  %v916 = vsel %vm909, %v912, %v915
  %v917 = vsel %vm906, nan, %v916
  %v918 = vsel %vm762, %v759, %v917
  %vm919 = vcmask 64512
  %v921 = vsel %vm919, %v918, 0
  %923 = vmatpush.msra.mxu0 0.0
  %924 = vmatpush.msra.mxu0 0.0
  %925 = vmatpush.msra.mxu0 0.0
  %926 = vmatpush.msra.mxu0 0.0
  %927 = vmatpush.msra.mxu0 0.0
  %928 = vmatpush.msra.mxu0 0.0
  %929 = vmatpush.msra.mxu0 0.0
  %930 = vmatpush.msra.mxu0 0.0
  %931 = vmatpush.msra.mxu0 0.0
  %932 = vmatpush.msra.mxu0 0.0
  %933 = vmatpush.msra.mxu0 0.0
  %934 = vmatpush.msra.mxu0 0.0
  %935 = vmatpush.msra.mxu0 0.0
  %936 = vmatpush.msra.mxu0 0.0
  %937 = vmatpush.msra.mxu0 0.0
  %938 = vmatpush.msra.mxu0 %v32
  %939 = vmatmul.f32.gmra.mxu0 %v921
  %v940 = vpop.f32.mrf.mxu0
  %v941 = vadd.f32 0.0, %v940
  %942 = vdwg.mxu0
  %944 = vrot.lane.b32.xlu0 %v749, 64
  %v945 = vpop.permute.xlu0 %944
  %v946 = vsel %vm199, %v945, 0
  %948 = vmatpush.msra.mxu0 0.0
  %949 = vmatpush.msra.mxu0 0.0
  %950 = vmatpush.msra.mxu0 0.0
  %951 = vmatpush.msra.mxu0 0.0
  %952 = vmatpush.msra.mxu0 0.0
  %953 = vmatpush.msra.mxu0 0.0
  %954 = vmatpush.msra.mxu0 0.0
  %955 = vmatpush.msra.mxu0 0.0
  %956 = vmatpush.msra.mxu0 0.0
  %957 = vmatpush.msra.mxu0 0.0
  %958 = vmatpush.msra.mxu0 0.0
  %959 = vmatpush.msra.mxu0 0.0
  %960 = vmatpush.msra.mxu0 %v31
  %961 = vmatpush.msra.mxu0 %v30
  %962 = vmatpush.msra.mxu0 %v29
  %963 = vmatpush.msra.mxu0 %v28
  %964 = vmatmul.f32.gmra.mxu0 %v946
  %v965 = vpop.f32.mrf.mxu0
  %v966 = vadd.f32 %v941, %v965
  %967 = vdwg.mxu0
  %v968 = vperm.slane %v37, 0
  %v969 = vadd.f32 %v966, %v968
  %v970 = vmul.f32 %v969, %v114
  %v971 = vadd.f32 %v970, %v69
  %972 = vst.msk [vmem:[%s4] sm:$0xff] %vm46, %v971
  // Predicated region
  $region18: #{forward.1} parent=0 // pred_check
    _
  $region19: #{forward.1} parent=0 // pred_check_branch
    %974 = sbr.rel (0) target = $region21
  $region20: #{forward.1} parent=0 // pred_region
    _
  $region21: #{forward.1} parent=0 // pred_fallthru
    _
  // Predicated region
  $region22: #{forward.1} parent=0 // pred_check
    _
  $region23: #{forward.1} parent=0 // pred_check_branch
    %976 = sbr.rel (0) target = $region25
  $region24: #{forward.1} parent=0 // pred_region
    _
  $region25: #{forward.1} parent=0 // pred_fallthru
    _

</llo_original>
